<compile_context>
chip_gen: v5e
topology: v5e:2x2
jax: 0.10.0
libtpu: 0.0.40
codegen_flags: <defaults>
</compile_context>

<pallas_src>
import math

import jax
import jax.numpy as jnp
from jax.experimental import pallas as pl
from jax.experimental.pallas import tpu as pltpu


# ---------------------------------------------------------------------------
# Host-side constant construction
# ---------------------------------------------------------------------------
def _bilinear_matrix(in_size, out_size):
    """PyTorch F.interpolate(mode='bilinear', align_corners=False) as a matrix."""
    scale = in_size / out_size
    i = jnp.arange(out_size, dtype=jnp.float32)
    src = jnp.maximum((i + 0.5) * scale - 0.5, 0.0)     # PyTorch clamps negative coords
    x0 = jnp.clip(jnp.floor(src).astype(jnp.int32), 0, in_size - 1)
    x1 = jnp.minimum(x0 + 1, in_size - 1)
    lam = jnp.clip(src - x0.astype(jnp.float32), 0.0, 1.0)
    m = (jax.nn.one_hot(x0, in_size, dtype=jnp.float32) * (1.0 - lam)[:, None]
         + jax.nn.one_hot(x1, in_size, dtype=jnp.float32) * lam[:, None])
    return m  # (out_size, in_size)


def _conv_band_matrices(w, W):
    """Fold a (C_out, C_in, 3, 3) conv's dx taps + W zero-padding into 3 matrices.

    For a padded slab P (H+2, C_in*W) with P[r, ci*W + w] = X[ci, r-1, w] and zero
    border rows:  conv_out[h, co*W + wo] = sum_dy (P[h+dy, :] @ G[dy])[co*W + wo].
    Returns G of shape (3, C_in*W, C_out*W).
    """
    C_out, C_in = w.shape[0], w.shape[1]
    w = w.astype(jnp.float32)
    mats = []
    for dy in range(3):
        acc = jnp.zeros((C_in, W, C_out, W), jnp.float32)
        for dx in range(3):
            # S[w_in, w_out] = 1  iff  w_in == w_out + dx - 1  (zero pad at W borders)
            S = jnp.eye(W, W, k=-(dx - 1), dtype=jnp.float32)
            acc = acc + w[:, :, dy, dx].T[:, None, :, None] * S[None, :, None, :]
        mats.append(acc.reshape(C_in * W, C_out * W))
    return jnp.stack(mats)


def _build_network_consts(params, C0, H0, W0):
    """Flattened constant arrays + static per-op metadata for the fused kernel."""
    num_up = params["num_up"]
    consts, ops = [], []
    H, W = H0, W0

    # head conv (bias, no activation)
    consts += [_conv_band_matrices(params["head_w"], W),
               jnp.repeat(params["head_b"].astype(jnp.float32), W).reshape(1, -1)]
    ops.append(("conv", H, False, False))

    for i in range(num_up):
        w_f, b_f = params["body"][i]
        c_out = w_f.shape[0]
        consts += [_conv_band_matrices(w_f, W),
                   jnp.repeat(b_f.astype(jnp.float32), W).reshape(1, -1)]
        ops.append(("conv", H, True, False))
        # 2x bilinear upsample, batched over channels along the lane dim
        mh = _bilinear_matrix(H, 2 * H)                               # (2H, H)
        mw_t = _bilinear_matrix(W, 2 * W).T                           # (W, 2W)
        consts += [mh, jnp.kron(jnp.eye(c_out, dtype=jnp.float32), mw_t)]
        ops.append(("up", H))
        H, W = 2 * H, 2 * W

    # end conv (no bias in the torch module -> zero bias) + sigmoid
    consts += [_conv_band_matrices(params["end_w"], W),
               jnp.repeat(params["end_b"].astype(jnp.float32), W).reshape(1, -1)]
    ops.append(("conv", H, False, True))
    return consts, ops


# ---------------------------------------------------------------------------
# Fused Pallas kernel
# ---------------------------------------------------------------------------
def _make_fused_kernel(ops, Kw):
    n_consts = 2 * len(ops)

    def kernel(*args):
        x_ref = args[0]
        const_refs = args[1:1 + n_consts]
        o_ref = args[1 + n_consts]
        pad_ref = args[2 + n_consts]                 # VMEM scratch (H_max + 2, Kw)

        a = x_ref[0]                                 # (H0, Kw) activation slab (value)
        zero_row = jnp.zeros((1, Kw), jnp.float32)
        ci = 0
        for op in ops:
            if op[0] == "conv":
                _, H, relu, sigmoid = op
                g_ref, b_ref = const_refs[ci], const_refs[ci + 1]
                ci += 2
                # zero-pad in H inside VMEM (rows 0 and H+1), then 3 MXU matmuls
                pad_ref[0:1, :] = zero_row
                pad_ref[H + 1:H + 2, :] = zero_row
                pad_ref[1:H + 1, :] = a
                acc = jnp.dot(pad_ref[0:H, :], g_ref[0],
                              preferred_element_type=jnp.float32)
                acc = acc + jnp.dot(pad_ref[1:H + 1, :], g_ref[1],
                                    preferred_element_type=jnp.float32)
                acc = acc + jnp.dot(pad_ref[2:H + 2, :], g_ref[2],
                                    preferred_element_type=jnp.float32)
                acc = acc + b_ref[...]
                if relu:
                    acc = jnp.maximum(acc, 0.0)
                if sigmoid:
                    acc = jax.nn.sigmoid(acc)
                a = acc
            else:  # "up": 2x bilinear upsample, channels batched along lanes
                mh_ref, bd_ref = const_refs[ci], const_refs[ci + 1]
                ci += 2
                t = jnp.dot(mh_ref[...], a, preferred_element_type=jnp.float32)
                a = jnp.dot(t, bd_ref[...], preferred_element_type=jnp.float32)
        o_ref[0] = a

    return kernel


def basic_irnet_forward(params, x):
    N, C0, H0, W0 = x.shape
    num_up = params["num_up"]
    upscale = 2 ** num_up
    Ho, Wo = H0 * upscale, W0 * upscale
    Kw = C0 * W0        # C*W is constant across stages (channels halve, W doubles)

    consts, ops = _build_network_consts(params, C0, H0, W0)
    kernel = _make_fused_kernel(ops, Kw)

    # (N, C, H, W) -> lane-dense per-batch slab (N, H, C*W)
    x_slab = jnp.transpose(x, (0, 2, 1, 3)).reshape(N, H0, Kw).astype(jnp.float32)

    in_specs = [pl.BlockSpec((1, H0, Kw), lambda n: (n, 0, 0))]
    for c in consts:
        # Constants: full-array blocks, same block index every step -> fetched once.
        in_specs.append(pl.BlockSpec(c.shape, lambda n, _nd=c.ndim: (0,) * _nd))

    out = pl.pallas_call(
        kernel,
        out_shape=jax.ShapeDtypeStruct((N, Ho, Wo), jnp.float32),
        grid=(N,),
        in_specs=in_specs,
        out_specs=pl.BlockSpec((1, Ho, Wo), lambda n: (n, 0, 0)),
        scratch_shapes=[pltpu.VMEM((Ho + 2, Kw), jnp.float32)],
        compiler_params=pltpu.CompilerParams(
            dimension_semantics=("parallel",)),       # v7x: shard batches over 2 TCs
    )(x_slab, *consts)
    return out.reshape(N, 1, Ho, Wo)


# ---------------------------------------------------------------------------
# Parameter construction (eval-mode BN folded into the conv)
# ---------------------------------------------------------------------------
def init_params(key, in_plane, upscale):
    num_up = int(math.log2(upscale))
    params = {}
    k = key

    def nrm(k, shape, scale):
        return jax.random.normal(k, shape, jnp.float32) * scale

    # head: Conv2d(in_plane, in_plane, 3, padding=1, bias=True)
    k, k1, k2 = jax.random.split(k, 3)
    fan_in = in_plane * 9
    params["head_w"] = nrm(k1, (in_plane, in_plane, 3, 3), 1.0 / math.sqrt(fan_in))
    params["head_b"] = nrm(k2, (in_plane,), 0.1)

    # body: conv3x3 (no bias) + BatchNorm2d + ReLU, channels halve each stage
    params["body"] = []
    for i in range(num_up):
        cin = in_plane // (2 ** i)
        cout = in_plane // (2 ** (i + 1))
        k, k1, k2, k3 = jax.random.split(k, 4)
        w = nrm(k1, (cout, cin, 3, 3), 1.0 / math.sqrt(cin * 9))
        gamma = 1.0 + 0.1 * jax.random.normal(k2, (cout,), jnp.float32)
        beta = 0.1 * jax.random.normal(k3, (cout,), jnp.float32)
        rmean = jnp.zeros((cout,), jnp.float32)
        rvar = jnp.ones((cout,), jnp.float32)
        scale = gamma / jnp.sqrt(rvar + 1e-5)         # fold eval-mode BN
        params["body"].append((w * scale[:, None, None, None], beta - rmean * scale))

    # end: Conv2d(in_plane / 2**num_up, 1, 3, padding=1, bias=False)
    cend = in_plane // (2 ** num_up)
    k, k1 = jax.random.split(k)
    params["end_w"] = nrm(k1, (1, cend, 3, 3), 1.0 / math.sqrt(cend * 9))
    params["end_b"] = jnp.zeros((1,), jnp.float32)
    params["num_up"] = num_up
    return params


# ---------------------------------------------------------------------------
# Pure-JAX reference (for numerical validation)
# ---------------------------------------------------------------------------
def _reference_forward(params, x):
    hi = jax.lax.Precision.HIGHEST

    def conv(h, w, b):
        y = jax.lax.conv_general_dilated(
            h, w, window_strides=(1, 1), padding=((1, 1), (1, 1)),
            dimension_numbers=("NCHW", "OIHW", "NCHW"), precision=hi)
        return y + b[None, :, None, None]

    def up2(h):
        _, _, H, W = h.shape
        mh = _bilinear_matrix(H, 2 * H)
        mw = _bilinear_matrix(W, 2 * W)
        return jnp.einsum("ph,nchw,qw->ncpq", mh, h, mw, precision=hi)

    y = conv(x, params["head_w"], params["head_b"])
    for (w, b) in params["body"]:
        y = up2(jnp.maximum(conv(y, w, b), 0.0))
    return jax.nn.sigmoid(conv(y, params["end_w"], params["end_b"]))


if __name__ == "__main__":
    in_plane, upscale = 8, 4          # num_upsample = 2
    N, H, W = 2, 16, 16

    key = jax.random.PRNGKey(0)
    kx, kp = jax.random.split(key)
    x = jax.random.normal(kx, (N, in_plane, H, W), jnp.float32)
    params = init_params(kp, in_plane, upscale)

    fwd = jax.jit(lambda inp: basic_irnet_forward(params, inp))
    out = jax.block_until_ready(fwd(x))

    expected_shape = (N, 1, H * upscale, W * upscale)
    assert out.shape == expected_shape, (out.shape, expected_shape)
    assert bool(jnp.all(jnp.isfinite(out)))
    assert bool(jnp.all((out >= 0.0) & (out <= 1.0)))   # sigmoid output range

    ref = jax.block_until_ready(_reference_forward(params, x))
    max_err = float(jnp.max(jnp.abs(out - ref)))
    assert max_err < 5e-3, f"mismatch vs pure-JAX reference: max abs err = {max_err}"
    print("KERNEL_OK")
</pallas_src>

<mosaic_0001>
module attributes {stable_mosaic.version = 11 : i64} {
  func.func @kernel(%arg0: i32, %arg1: memref<1x16x128xf32, #tpu.memory_space<vmem>>, %arg2: memref<3x128x128xf32, #tpu.memory_space<vmem>>, %arg3: memref<1x128xf32, #tpu.memory_space<vmem>>, %arg4: memref<3x128x64xf32, #tpu.memory_space<vmem>>, %arg5: memref<1x64xf32, #tpu.memory_space<vmem>>, %arg6: memref<32x16xf32, #tpu.memory_space<vmem>>, %arg7: memref<64x128xf32, #tpu.memory_space<vmem>>, %arg8: memref<3x128x64xf32, #tpu.memory_space<vmem>>, %arg9: memref<1x64xf32, #tpu.memory_space<vmem>>, %arg10: memref<64x32xf32, #tpu.memory_space<vmem>>, %arg11: memref<64x128xf32, #tpu.memory_space<vmem>>, %arg12: memref<3x128x64xf32, #tpu.memory_space<vmem>>, %arg13: memref<1x64xf32, #tpu.memory_space<vmem>>, %arg14: memref<1x64x64xf32, #tpu.memory_space<vmem>>, %arg15: memref<66x128xf32, #tpu.memory_space<vmem>>) attributes {dimension_semantics = [#tpu.dimension_semantics<parallel>], iteration_bounds = array<i64: 2>, scalar_prefetch = 0 : i64, scratch_operands = 1 : i64, tpu.core_type = #tpu.core_type<tc>, window_params = [{transform_indices = @transform_0, window_bounds = array<i64: 1, 16, 128>}, {pipeline_mode = #tpu.pipeline_mode<synchronous>, transform_indices = @transform_1, window_bounds = array<i64: 3, 128, 128>}, {pipeline_mode = #tpu.pipeline_mode<synchronous>, transform_indices = @transform_2, window_bounds = array<i64: 1, 128>}, {pipeline_mode = #tpu.pipeline_mode<synchronous>, transform_indices = @transform_3, window_bounds = array<i64: 3, 128, 64>}, {pipeline_mode = #tpu.pipeline_mode<synchronous>, transform_indices = @transform_4, window_bounds = array<i64: 1, 64>}, {pipeline_mode = #tpu.pipeline_mode<synchronous>, transform_indices = @transform_5, window_bounds = array<i64: 32, 16>}, {pipeline_mode = #tpu.pipeline_mode<synchronous>, transform_indices = @transform_6, window_bounds = array<i64: 64, 128>}, {pipeline_mode = #tpu.pipeline_mode<synchronous>, transform_indices = @transform_7, window_bounds = array<i64: 3, 128, 64>}, {pipeline_mode = #tpu.pipeline_mode<synchronous>, transform_indices = @transform_8, window_bounds = array<i64: 1, 64>}, {pipeline_mode = #tpu.pipeline_mode<synchronous>, transform_indices = @transform_9, window_bounds = array<i64: 64, 32>}, {pipeline_mode = #tpu.pipeline_mode<synchronous>, transform_indices = @transform_10, window_bounds = array<i64: 64, 128>}, {pipeline_mode = #tpu.pipeline_mode<synchronous>, transform_indices = @transform_11, window_bounds = array<i64: 3, 128, 64>}, {pipeline_mode = #tpu.pipeline_mode<synchronous>, transform_indices = @transform_12, window_bounds = array<i64: 1, 64>}, {transform_indices = @transform_13, window_bounds = array<i64: 1, 64, 64>}]} {
    %c0 = arith.constant 0 : index
    %c0_0 = arith.constant 0 : index
    %c0_1 = arith.constant 0 : index
    %0 = vector.load %arg1[%c0, %c0_0, %c0_1] : memref<1x16x128xf32, #tpu.memory_space<vmem>>, vector<1x16x128xf32>
    %1 = vector.shape_cast %0 : vector<1x16x128xf32> to vector<16x128xf32>
    %cst = arith.constant 0.000000e+00 : f32
    %2 = vector.broadcast %cst : f32 to vector<1x128xf32>
    %c0_2 = arith.constant 0 : index
    %c0_3 = arith.constant 0 : index
    %3 = vector.load %arg15[%c0_2, %c0_3] : memref<66x128xf32, #tpu.memory_space<vmem>>, vector<1x128xf32>
    tpu.vector_store %arg15[%c0_2, %c0_3], %2 {strides = array<i32>} : memref<66x128xf32, #tpu.memory_space<vmem>>, vector<1x128xf32>,
    %c17 = arith.constant 17 : index
    %c0_4 = arith.constant 0 : index
    %4 = vector.load %arg15[%c17, %c0_4] : memref<66x128xf32, #tpu.memory_space<vmem>>, vector<1x128xf32>
    tpu.vector_store %arg15[%c17, %c0_4], %2 {strides = array<i32>} : memref<66x128xf32, #tpu.memory_space<vmem>>, vector<1x128xf32>,
    %c1 = arith.constant 1 : index
    %c0_5 = arith.constant 0 : index
    %5 = vector.load %arg15[%c1, %c0_5] : memref<66x128xf32, #tpu.memory_space<vmem>>, vector<16x128xf32>
    tpu.vector_store %arg15[%c1, %c0_5], %1 {strides = array<i32>} : memref<66x128xf32, #tpu.memory_space<vmem>>, vector<16x128xf32>,
    %c0_6 = arith.constant 0 : index
    %c0_7 = arith.constant 0 : index
    %6 = vector.load %arg15[%c0_6, %c0_7] : memref<66x128xf32, #tpu.memory_space<vmem>>, vector<16x128xf32>
    %c0_8 = arith.constant 0 : index
    %c0_9 = arith.constant 0 : index
    %c0_10 = arith.constant 0 : index
    %7 = vector.load %arg2[%c0_8, %c0_9, %c0_10] : memref<3x128x128xf32, #tpu.memory_space<vmem>>, vector<1x128x128xf32>
    %8 = vector.shape_cast %7 : vector<1x128x128xf32> to vector<128x128xf32>
    %cst_11 = arith.constant dense<0.000000e+00> : vector<16x128xf32>
    %9 = tpu.matmul %6, %8, %cst_11 {dimension_numbers = #tpu.dot_dimension_numbers<[1], [0], [0], [1], [0, 0, 1, 1], [], []>} : vector<16x128xf32>, vector<128x128xf32>, vector<16x128xf32> -> vector<16x128xf32>
    %c1_12 = arith.constant 1 : index
    %c0_13 = arith.constant 0 : index
    %10 = vector.load %arg15[%c1_12, %c0_13] : memref<66x128xf32, #tpu.memory_space<vmem>>, vector<16x128xf32>
    %c1_14 = arith.constant 1 : index
    %c0_15 = arith.constant 0 : index
    %c0_16 = arith.constant 0 : index
    %11 = vector.load %arg2[%c1_14, %c0_15, %c0_16] : memref<3x128x128xf32, #tpu.memory_space<vmem>>, vector<1x128x128xf32>
    %12 = vector.shape_cast %11 : vector<1x128x128xf32> to vector<128x128xf32>
    %cst_17 = arith.constant dense<0.000000e+00> : vector<16x128xf32>
    %13 = tpu.matmul %10, %12, %cst_17 {dimension_numbers = #tpu.dot_dimension_numbers<[1], [0], [0], [1], [0, 0, 1, 1], [], []>} : vector<16x128xf32>, vector<128x128xf32>, vector<16x128xf32> -> vector<16x128xf32>
    %14 = arith.addf %9, %13 : vector<16x128xf32>
    %c2 = arith.constant 2 : index
    %c0_18 = arith.constant 0 : index
    %15 = vector.load %arg15[%c2, %c0_18] : memref<66x128xf32, #tpu.memory_space<vmem>>, vector<16x128xf32>
    %c2_19 = arith.constant 2 : index
    %c0_20 = arith.constant 0 : index
    %c0_21 = arith.constant 0 : index
    %16 = vector.load %arg2[%c2_19, %c0_20, %c0_21] : memref<3x128x128xf32, #tpu.memory_space<vmem>>, vector<1x128x128xf32>
    %17 = vector.shape_cast %16 : vector<1x128x128xf32> to vector<128x128xf32>
    %cst_22 = arith.constant dense<0.000000e+00> : vector<16x128xf32>
    %18 = tpu.matmul %15, %17, %cst_22 {dimension_numbers = #tpu.dot_dimension_numbers<[1], [0], [0], [1], [0, 0, 1, 1], [], []>} : vector<16x128xf32>, vector<128x128xf32>, vector<16x128xf32> -> vector<16x128xf32>
    %19 = arith.addf %14, %18 : vector<16x128xf32>
    %c0_23 = arith.constant 0 : index
    %c0_24 = arith.constant 0 : index
    %20 = vector.load %arg3[%c0_23, %c0_24] : memref<1x128xf32, #tpu.memory_space<vmem>>, vector<1x128xf32>
    %21 = vector.broadcast %20 : vector<1x128xf32> to vector<16x128xf32>
    %22 = arith.addf %19, %21 : vector<16x128xf32>
    %c0_25 = arith.constant 0 : index
    %c0_26 = arith.constant 0 : index
    %23 = vector.load %arg15[%c0_25, %c0_26] : memref<66x128xf32, #tpu.memory_space<vmem>>, vector<1x128xf32>
    tpu.vector_store %arg15[%c0_25, %c0_26], %2 {strides = array<i32>} : memref<66x128xf32, #tpu.memory_space<vmem>>, vector<1x128xf32>,
    %c17_27 = arith.constant 17 : index
    %c0_28 = arith.constant 0 : index
    %24 = vector.load %arg15[%c17_27, %c0_28] : memref<66x128xf32, #tpu.memory_space<vmem>>, vector<1x128xf32>
    tpu.vector_store %arg15[%c17_27, %c0_28], %2 {strides = array<i32>} : memref<66x128xf32, #tpu.memory_space<vmem>>, vector<1x128xf32>,
    %c1_29 = arith.constant 1 : index
    %c0_30 = arith.constant 0 : index
    %25 = vector.load %arg15[%c1_29, %c0_30] : memref<66x128xf32, #tpu.memory_space<vmem>>, vector<16x128xf32>
    tpu.vector_store %arg15[%c1_29, %c0_30], %22 {strides = array<i32>} : memref<66x128xf32, #tpu.memory_space<vmem>>, vector<16x128xf32>,
    %c0_31 = arith.constant 0 : index
    %c0_32 = arith.constant 0 : index
    %26 = vector.load %arg15[%c0_31, %c0_32] : memref<66x128xf32, #tpu.memory_space<vmem>>, vector<16x128xf32>
    %c0_33 = arith.constant 0 : index
    %c0_34 = arith.constant 0 : index
    %c0_35 = arith.constant 0 : index
    %27 = vector.load %arg4[%c0_33, %c0_34, %c0_35] : memref<3x128x64xf32, #tpu.memory_space<vmem>>, vector<1x128x64xf32>
    %28 = vector.shape_cast %27 : vector<1x128x64xf32> to vector<128x64xf32>
    %cst_36 = arith.constant dense<0.000000e+00> : vector<16x64xf32>
    %29 = tpu.matmul %26, %28, %cst_36 {dimension_numbers = #tpu.dot_dimension_numbers<[1], [0], [0], [1], [0, 0, 1, 1], [], []>} : vector<16x128xf32>, vector<128x64xf32>, vector<16x64xf32> -> vector<16x64xf32>
    %c1_37 = arith.constant 1 : index
    %c0_38 = arith.constant 0 : index
    %30 = vector.load %arg15[%c1_37, %c0_38] : memref<66x128xf32, #tpu.memory_space<vmem>>, vector<16x128xf32>
    %c1_39 = arith.constant 1 : index
    %c0_40 = arith.constant 0 : index
    %c0_41 = arith.constant 0 : index
    %31 = vector.load %arg4[%c1_39, %c0_40, %c0_41] : memref<3x128x64xf32, #tpu.memory_space<vmem>>, vector<1x128x64xf32>
    %32 = vector.shape_cast %31 : vector<1x128x64xf32> to vector<128x64xf32>
    %cst_42 = arith.constant dense<0.000000e+00> : vector<16x64xf32>
    %33 = tpu.matmul %30, %32, %cst_42 {dimension_numbers = #tpu.dot_dimension_numbers<[1], [0], [0], [1], [0, 0, 1, 1], [], []>} : vector<16x128xf32>, vector<128x64xf32>, vector<16x64xf32> -> vector<16x64xf32>
    %34 = arith.addf %29, %33 : vector<16x64xf32>
    %c2_43 = arith.constant 2 : index
    %c0_44 = arith.constant 0 : index
    %35 = vector.load %arg15[%c2_43, %c0_44] : memref<66x128xf32, #tpu.memory_space<vmem>>, vector<16x128xf32>
    %c2_45 = arith.constant 2 : index
    %c0_46 = arith.constant 0 : index
    %c0_47 = arith.constant 0 : index
    %36 = vector.load %arg4[%c2_45, %c0_46, %c0_47] : memref<3x128x64xf32, #tpu.memory_space<vmem>>, vector<1x128x64xf32>
    %37 = vector.shape_cast %36 : vector<1x128x64xf32> to vector<128x64xf32>
    %cst_48 = arith.constant dense<0.000000e+00> : vector<16x64xf32>
    %38 = tpu.matmul %35, %37, %cst_48 {dimension_numbers = #tpu.dot_dimension_numbers<[1], [0], [0], [1], [0, 0, 1, 1], [], []>} : vector<16x128xf32>, vector<128x64xf32>, vector<16x64xf32> -> vector<16x64xf32>
    %39 = arith.addf %34, %38 : vector<16x64xf32>
    %c0_49 = arith.constant 0 : index
    %c0_50 = arith.constant 0 : index
    %40 = vector.load %arg5[%c0_49, %c0_50] : memref<1x64xf32, #tpu.memory_space<vmem>>, vector<1x64xf32>
    %41 = vector.broadcast %40 : vector<1x64xf32> to vector<16x64xf32>
    %42 = arith.addf %39, %41 : vector<16x64xf32>
    %cst_51 = arith.constant 0.000000e+00 : f32
    %43 = vector.broadcast %cst_51 : f32 to vector<16x64xf32>
    %44 = arith.maximumf %42, %43 : vector<16x64xf32>
    %c0_52 = arith.constant 0 : index
    %c0_53 = arith.constant 0 : index
    %45 = vector.load %arg6[%c0_52, %c0_53] : memref<32x16xf32, #tpu.memory_space<vmem>>, vector<32x16xf32>
    %cst_54 = arith.constant dense<0.000000e+00> : vector<32x64xf32>
    %46 = tpu.matmul %45, %44, %cst_54 {dimension_numbers = #tpu.dot_dimension_numbers<[1], [0], [0], [1], [0, 0, 1, 1], [], []>} : vector<32x16xf32>, vector<16x64xf32>, vector<32x64xf32> -> vector<32x64xf32>
    %c0_55 = arith.constant 0 : index
    %c0_56 = arith.constant 0 : index
    %47 = vector.load %arg7[%c0_55, %c0_56] : memref<64x128xf32, #tpu.memory_space<vmem>>, vector<64x128xf32>
    %cst_57 = arith.constant dense<0.000000e+00> : vector<32x128xf32>
    %48 = tpu.matmul %46, %47, %cst_57 {dimension_numbers = #tpu.dot_dimension_numbers<[1], [0], [0], [1], [0, 0, 1, 1], [], []>} : vector<32x64xf32>, vector<64x128xf32>, vector<32x128xf32> -> vector<32x128xf32>
    %c0_58 = arith.constant 0 : index
    %c0_59 = arith.constant 0 : index
    %49 = vector.load %arg15[%c0_58, %c0_59] : memref<66x128xf32, #tpu.memory_space<vmem>>, vector<1x128xf32>
    tpu.vector_store %arg15[%c0_58, %c0_59], %2 {strides = array<i32>} : memref<66x128xf32, #tpu.memory_space<vmem>>, vector<1x128xf32>,
    %c33 = arith.constant 33 : index
    %c0_60 = arith.constant 0 : index
    %50 = vector.load %arg15[%c33, %c0_60] : memref<66x128xf32, #tpu.memory_space<vmem>>, vector<1x128xf32>
    tpu.vector_store %arg15[%c33, %c0_60], %2 {strides = array<i32>} : memref<66x128xf32, #tpu.memory_space<vmem>>, vector<1x128xf32>,
    %c1_61 = arith.constant 1 : index
    %c0_62 = arith.constant 0 : index
    %51 = vector.load %arg15[%c1_61, %c0_62] : memref<66x128xf32, #tpu.memory_space<vmem>>, vector<32x128xf32>
    tpu.vector_store %arg15[%c1_61, %c0_62], %48 {strides = array<i32>} : memref<66x128xf32, #tpu.memory_space<vmem>>, vector<32x128xf32>,
    %c0_63 = arith.constant 0 : index
    %c0_64 = arith.constant 0 : index
    %52 = vector.load %arg15[%c0_63, %c0_64] : memref<66x128xf32, #tpu.memory_space<vmem>>, vector<32x128xf32>
    %c0_65 = arith.constant 0 : index
    %c0_66 = arith.constant 0 : index
    %c0_67 = arith.constant 0 : index
    %53 = vector.load %arg8[%c0_65, %c0_66, %c0_67] : memref<3x128x64xf32, #tpu.memory_space<vmem>>, vector<1x128x64xf32>
    %54 = vector.shape_cast %53 : vector<1x128x64xf32> to vector<128x64xf32>
    %cst_68 = arith.constant dense<0.000000e+00> : vector<32x64xf32>
    %55 = tpu.matmul %52, %54, %cst_68 {dimension_numbers = #tpu.dot_dimension_numbers<[1], [0], [0], [1], [0, 0, 1, 1], [], []>} : vector<32x128xf32>, vector<128x64xf32>, vector<32x64xf32> -> vector<32x64xf32>
    %c1_69 = arith.constant 1 : index
    %c0_70 = arith.constant 0 : index
    %56 = vector.load %arg15[%c1_69, %c0_70] : memref<66x128xf32, #tpu.memory_space<vmem>>, vector<32x128xf32>
    %c1_71 = arith.constant 1 : index
    %c0_72 = arith.constant 0 : index
    %c0_73 = arith.constant 0 : index
    %57 = vector.load %arg8[%c1_71, %c0_72, %c0_73] : memref<3x128x64xf32, #tpu.memory_space<vmem>>, vector<1x128x64xf32>
    %58 = vector.shape_cast %57 : vector<1x128x64xf32> to vector<128x64xf32>
    %cst_74 = arith.constant dense<0.000000e+00> : vector<32x64xf32>
    %59 = tpu.matmul %56, %58, %cst_74 {dimension_numbers = #tpu.dot_dimension_numbers<[1], [0], [0], [1], [0, 0, 1, 1], [], []>} : vector<32x128xf32>, vector<128x64xf32>, vector<32x64xf32> -> vector<32x64xf32>
    %60 = arith.addf %55, %59 : vector<32x64xf32>
    %c2_75 = arith.constant 2 : index
    %c0_76 = arith.constant 0 : index
    %61 = vector.load %arg15[%c2_75, %c0_76] : memref<66x128xf32, #tpu.memory_space<vmem>>, vector<32x128xf32>
    %c2_77 = arith.constant 2 : index
    %c0_78 = arith.constant 0 : index
    %c0_79 = arith.constant 0 : index
    %62 = vector.load %arg8[%c2_77, %c0_78, %c0_79] : memref<3x128x64xf32, #tpu.memory_space<vmem>>, vector<1x128x64xf32>
    %63 = vector.shape_cast %62 : vector<1x128x64xf32> to vector<128x64xf32>
    %cst_80 = arith.constant dense<0.000000e+00> : vector<32x64xf32>
    %64 = tpu.matmul %61, %63, %cst_80 {dimension_numbers = #tpu.dot_dimension_numbers<[1], [0], [0], [1], [0, 0, 1, 1], [], []>} : vector<32x128xf32>, vector<128x64xf32>, vector<32x64xf32> -> vector<32x64xf32>
    %65 = arith.addf %60, %64 : vector<32x64xf32>
    %c0_81 = arith.constant 0 : index
    %c0_82 = arith.constant 0 : index
    %66 = vector.load %arg9[%c0_81, %c0_82] : memref<1x64xf32, #tpu.memory_space<vmem>>, vector<1x64xf32>
    %67 = vector.broadcast %66 : vector<1x64xf32> to vector<32x64xf32>
    %68 = arith.addf %65, %67 : vector<32x64xf32>
    %cst_83 = arith.constant 0.000000e+00 : f32
    %69 = vector.broadcast %cst_83 : f32 to vector<32x64xf32>
    %70 = arith.maximumf %68, %69 : vector<32x64xf32>
    %c0_84 = arith.constant 0 : index
    %c0_85 = arith.constant 0 : index
    %71 = vector.load %arg10[%c0_84, %c0_85] : memref<64x32xf32, #tpu.memory_space<vmem>>, vector<64x32xf32>
    %cst_86 = arith.constant dense<0.000000e+00> : vector<64x64xf32>
    %72 = tpu.matmul %71, %70, %cst_86 {dimension_numbers = #tpu.dot_dimension_numbers<[1], [0], [0], [1], [0, 0, 1, 1], [], []>} : vector<64x32xf32>, vector<32x64xf32>, vector<64x64xf32> -> vector<64x64xf32>
    %c0_87 = arith.constant 0 : index
    %c0_88 = arith.constant 0 : index
    %73 = vector.load %arg11[%c0_87, %c0_88] : memref<64x128xf32, #tpu.memory_space<vmem>>, vector<64x128xf32>
    %cst_89 = arith.constant dense<0.000000e+00> : vector<64x128xf32>
    %74 = tpu.matmul %72, %73, %cst_89 {dimension_numbers = #tpu.dot_dimension_numbers<[1], [0], [0], [1], [0, 0, 1, 1], [], []>} : vector<64x64xf32>, vector<64x128xf32>, vector<64x128xf32> -> vector<64x128xf32>
    %c0_90 = arith.constant 0 : index
    %c0_91 = arith.constant 0 : index
    %75 = vector.load %arg15[%c0_90, %c0_91] : memref<66x128xf32, #tpu.memory_space<vmem>>, vector<1x128xf32>
    tpu.vector_store %arg15[%c0_90, %c0_91], %2 {strides = array<i32>} : memref<66x128xf32, #tpu.memory_space<vmem>>, vector<1x128xf32>,
    %c65 = arith.constant 65 : index
    %c0_92 = arith.constant 0 : index
    %76 = vector.load %arg15[%c65, %c0_92] : memref<66x128xf32, #tpu.memory_space<vmem>>, vector<1x128xf32>
    tpu.vector_store %arg15[%c65, %c0_92], %2 {strides = array<i32>} : memref<66x128xf32, #tpu.memory_space<vmem>>, vector<1x128xf32>,
    %c1_93 = arith.constant 1 : index
    %c0_94 = arith.constant 0 : index
    %77 = vector.load %arg15[%c1_93, %c0_94] : memref<66x128xf32, #tpu.memory_space<vmem>>, vector<64x128xf32>
    tpu.vector_store %arg15[%c1_93, %c0_94], %74 {strides = array<i32>} : memref<66x128xf32, #tpu.memory_space<vmem>>, vector<64x128xf32>,
    %c0_95 = arith.constant 0 : index
    %c0_96 = arith.constant 0 : index
    %78 = vector.load %arg15[%c0_95, %c0_96] : memref<66x128xf32, #tpu.memory_space<vmem>>, vector<64x128xf32>
    %c0_97 = arith.constant 0 : index
    %c0_98 = arith.constant 0 : index
    %c0_99 = arith.constant 0 : index
    %79 = vector.load %arg12[%c0_97, %c0_98, %c0_99] : memref<3x128x64xf32, #tpu.memory_space<vmem>>, vector<1x128x64xf32>
    %80 = vector.shape_cast %79 : vector<1x128x64xf32> to vector<128x64xf32>
    %cst_100 = arith.constant dense<0.000000e+00> : vector<64x64xf32>
    %81 = tpu.matmul %78, %80, %cst_100 {dimension_numbers = #tpu.dot_dimension_numbers<[1], [0], [0], [1], [0, 0, 1, 1], [], []>} : vector<64x128xf32>, vector<128x64xf32>, vector<64x64xf32> -> vector<64x64xf32>
    %c1_101 = arith.constant 1 : index
    %c0_102 = arith.constant 0 : index
    %82 = vector.load %arg15[%c1_101, %c0_102] : memref<66x128xf32, #tpu.memory_space<vmem>>, vector<64x128xf32>
    %c1_103 = arith.constant 1 : index
    %c0_104 = arith.constant 0 : index
    %c0_105 = arith.constant 0 : index
    %83 = vector.load %arg12[%c1_103, %c0_104, %c0_105] : memref<3x128x64xf32, #tpu.memory_space<vmem>>, vector<1x128x64xf32>
    %84 = vector.shape_cast %83 : vector<1x128x64xf32> to vector<128x64xf32>
    %cst_106 = arith.constant dense<0.000000e+00> : vector<64x64xf32>
    %85 = tpu.matmul %82, %84, %cst_106 {dimension_numbers = #tpu.dot_dimension_numbers<[1], [0], [0], [1], [0, 0, 1, 1], [], []>} : vector<64x128xf32>, vector<128x64xf32>, vector<64x64xf32> -> vector<64x64xf32>
    %86 = arith.addf %81, %85 : vector<64x64xf32>
    %c2_107 = arith.constant 2 : index
    %c0_108 = arith.constant 0 : index
    %87 = vector.load %arg15[%c2_107, %c0_108] : memref<66x128xf32, #tpu.memory_space<vmem>>, vector<64x128xf32>
    %c2_109 = arith.constant 2 : index
    %c0_110 = arith.constant 0 : index
    %c0_111 = arith.constant 0 : index
    %88 = vector.load %arg12[%c2_109, %c0_110, %c0_111] : memref<3x128x64xf32, #tpu.memory_space<vmem>>, vector<1x128x64xf32>
    %89 = vector.shape_cast %88 : vector<1x128x64xf32> to vector<128x64xf32>
    %cst_112 = arith.constant dense<0.000000e+00> : vector<64x64xf32>
    %90 = tpu.matmul %87, %89, %cst_112 {dimension_numbers = #tpu.dot_dimension_numbers<[1], [0], [0], [1], [0, 0, 1, 1], [], []>} : vector<64x128xf32>, vector<128x64xf32>, vector<64x64xf32> -> vector<64x64xf32>
    %91 = arith.addf %86, %90 : vector<64x64xf32>
    %c0_113 = arith.constant 0 : index
    %c0_114 = arith.constant 0 : index
    %92 = vector.load %arg13[%c0_113, %c0_114] : memref<1x64xf32, #tpu.memory_space<vmem>>, vector<1x64xf32>
    %93 = vector.broadcast %92 : vector<1x64xf32> to vector<64x64xf32>
    %94 = arith.addf %91, %93 : vector<64x64xf32>
    %95 = arith.negf %94 : vector<64x64xf32>
    %96 = math.exp %95 : vector<64x64xf32>
    %cst_115 = arith.constant 1.000000e+00 : f32
    %97 = vector.broadcast %cst_115 : f32 to vector<64x64xf32>
    %98 = arith.addf %97, %96 : vector<64x64xf32>
    %99 = arith.divf %97, %98 : vector<64x64xf32>
    %c0_116 = arith.constant 0 : index
    %c0_117 = arith.constant 0 : index
    %c0_118 = arith.constant 0 : index
    %100 = vector.load %arg14[%c0_116, %c0_117, %c0_118] : memref<1x64x64xf32, #tpu.memory_space<vmem>>, vector<1x64x64xf32>
    %101 = vector.shape_cast %100 : vector<1x64x64xf32> to vector<64x64xf32>
    %102 = vector.shape_cast %99 : vector<64x64xf32> to vector<1x64x64xf32>
    tpu.vector_store %arg14[%c0_116, %c0_117, %c0_118], %102 {strides = array<i32>} : memref<1x64x64xf32, #tpu.memory_space<vmem>>, vector<1x64x64xf32>,
    return
  }
  func.func @transform_0(%arg0: i32) -> (i32, i32, i32) {
    %c0_i32 = arith.constant 0 : i32
    %c0_i32_0 = arith.constant 0 : i32
    %c0_i32_1 = arith.constant 0 : i32
    return %arg0, %c0_i32, %c0_i32_0 : i32, i32, i32
  }
  func.func @transform_1(%arg0: i32) -> (i32, i32, i32) {
    %c0_i32 = arith.constant 0 : i32
    %c0_i32_0 = arith.constant 0 : i32
    %c0_i32_1 = arith.constant 0 : i32
    %c0_i32_2 = arith.constant 0 : i32
    return %c0_i32, %c0_i32_0, %c0_i32_1 : i32, i32, i32
  }
  func.func @transform_2(%arg0: i32) -> (i32, i32) {
    %c0_i32 = arith.constant 0 : i32
    %c0_i32_0 = arith.constant 0 : i32
    %c0_i32_1 = arith.constant 0 : i32
    return %c0_i32, %c0_i32_0 : i32, i32
  }
  func.func @transform_3(%arg0: i32) -> (i32, i32, i32) {
    %c0_i32 = arith.constant 0 : i32
    %c0_i32_0 = arith.constant 0 : i32
    %c0_i32_1 = arith.constant 0 : i32
    %c0_i32_2 = arith.constant 0 : i32
    return %c0_i32, %c0_i32_0, %c0_i32_1 : i32, i32, i32
  }
  func.func @transform_4(%arg0: i32) -> (i32, i32) {
    %c0_i32 = arith.constant 0 : i32
    %c0_i32_0 = arith.constant 0 : i32
    %c0_i32_1 = arith.constant 0 : i32
    return %c0_i32, %c0_i32_0 : i32, i32
  }
  func.func @transform_5(%arg0: i32) -> (i32, i32) {
    %c0_i32 = arith.constant 0 : i32
    %c0_i32_0 = arith.constant 0 : i32
    %c0_i32_1 = arith.constant 0 : i32
    return %c0_i32, %c0_i32_0 : i32, i32
  }
  func.func @transform_6(%arg0: i32) -> (i32, i32) {
    %c0_i32 = arith.constant 0 : i32
    %c0_i32_0 = arith.constant 0 : i32
    %c0_i32_1 = arith.constant 0 : i32
    return %c0_i32, %c0_i32_0 : i32, i32
  }
  func.func @transform_7(%arg0: i32) -> (i32, i32, i32) {
    %c0_i32 = arith.constant 0 : i32
    %c0_i32_0 = arith.constant 0 : i32
    %c0_i32_1 = arith.constant 0 : i32
    %c0_i32_2 = arith.constant 0 : i32
    return %c0_i32, %c0_i32_0, %c0_i32_1 : i32, i32, i32
  }
  func.func @transform_8(%arg0: i32) -> (i32, i32) {
    %c0_i32 = arith.constant 0 : i32
    %c0_i32_0 = arith.constant 0 : i32
    %c0_i32_1 = arith.constant 0 : i32
    return %c0_i32, %c0_i32_0 : i32, i32
  }
  func.func @transform_9(%arg0: i32) -> (i32, i32) {
    %c0_i32 = arith.constant 0 : i32
    %c0_i32_0 = arith.constant 0 : i32
    %c0_i32_1 = arith.constant 0 : i32
    return %c0_i32, %c0_i32_0 : i32, i32
  }
  func.func @transform_10(%arg0: i32) -> (i32, i32) {
    %c0_i32 = arith.constant 0 : i32
    %c0_i32_0 = arith.constant 0 : i32
    %c0_i32_1 = arith.constant 0 : i32
    return %c0_i32, %c0_i32_0 : i32, i32
  }
  func.func @transform_11(%arg0: i32) -> (i32, i32, i32) {
    %c0_i32 = arith.constant 0 : i32
    %c0_i32_0 = arith.constant 0 : i32
    %c0_i32_1 = arith.constant 0 : i32
    %c0_i32_2 = arith.constant 0 : i32
    return %c0_i32, %c0_i32_0, %c0_i32_1 : i32, i32, i32
  }
  func.func @transform_12(%arg0: i32) -> (i32, i32) {
    %c0_i32 = arith.constant 0 : i32
    %c0_i32_0 = arith.constant 0 : i32
    %c0_i32_1 = arith.constant 0 : i32
    return %c0_i32, %c0_i32_0 : i32, i32
  }
  func.func @transform_13(%arg0: i32) -> (i32, i32, i32) {
    %c0_i32 = arith.constant 0 : i32
    %c0_i32_0 = arith.constant 0 : i32
    %c0_i32_1 = arith.constant 0 : i32
    return %arg0, %c0_i32, %c0_i32_0 : i32, i32, i32
  }
}

</mosaic_0001>

<llo_original>
// kernel: _lambda_.1
$region0: #{_lambda_.1}
  #allocation0 [shape = 'u32[]', space=smem, size = 0x4, offset = 0x4, fixed_abs, tag = 'smem constant byte address 0x4 - core index']
  #allocation1 [shape = 'u32[72,128]{1,0:T(1,128)}', space=vmem, size = 0x9000, scoped, tag = 'internal scratch']
  #allocation2 [shape = 'f32[66,128]{1,0:T(8,128)}', space=vmem, size = 0x9000, scoped, tag = 'scratch operand']
  %s0 = inlined_call_operand.vmem [shape: f32[2,16,128], index: 0, kind: input, shape index: {}]
  %s1 = inlined_call_operand.vmem [shape: f32[3,128,128], index: 1, kind: input, shape index: {}]
  %s2 = inlined_call_operand.vmem [shape: f32[1,128], index: 2, kind: input, shape index: {}]
  %s3 = inlined_call_operand.vmem [shape: f32[3,128,64], index: 3, kind: input, shape index: {}]
  %s4 = inlined_call_operand.vmem [shape: f32[1,64], index: 4, kind: input, shape index: {}]
  %s5 = inlined_call_operand.vmem [shape: f32[32,16], index: 5, kind: input, shape index: {}]
  %s6 = inlined_call_operand.vmem [shape: f32[64,128], index: 6, kind: input, shape index: {}]
  %s7 = inlined_call_operand.vmem [shape: f32[3,128,64], index: 7, kind: input, shape index: {}]
  %s8 = inlined_call_operand.vmem [shape: f32[1,64], index: 8, kind: input, shape index: {}]
  %s9 = inlined_call_operand.vmem [shape: f32[64,32], index: 9, kind: input, shape index: {}]
  %s10 = inlined_call_operand.vmem [shape: f32[64,128], index: 10, kind: input, shape index: {}]
  %s11 = inlined_call_operand.vmem [shape: f32[3,128,64], index: 11, kind: input, shape index: {}]
  %s12 = inlined_call_operand.vmem [shape: f32[1,64], index: 12, kind: input, shape index: {}]
  %s13 = inlined_call_operand.hbm [shape: f32[2,64,64], index: 13, kind: output, shape index: {}]
  %s14 = sld [smem:[#allocation0]]
  $region85: #{_lambda_.1} parent=0
    _
  %s16 = ssub.s32 1, %s14
  %s17 = scalar_select 0, %s16, %s14
  $region1: #{_lambda_.1} parent=0
    #allocation3 [shape = 'u8[65536]{0}', space=vmem, size = 0x10000, scoped, tag = 'output window, operand 0']
    #allocation4 [shape = 's32[2]{0}', space=sflag, size = 0x8, scoped, tag = 'scoped memory for _lambda_.1']
    %18 = vsyncpa [#allocation4], 0
    %s19 = scalar_lea.sflag [#allocation4], 1
    %20 = vsyncpa %s19, 0
    loop: start=0, step=1, limit=4
    $region2: #{_lambda_.1} parent=1 // loop_pre_header
      _
    $region3: #{_lambda_.1} parent=1 // loop_header
      %s22 = sphi 0, %s26
      %p23 = scmp.ge.s32.totalorder %s22, 4
      %s32 = sphi 0, %s34
      %s35 = sphi 0, %s32
      %s36 = sphi 0, %s35
      %s52 = sphi 0, %s36
      %s56 = sphi 0, %s56
      %s58 = sphi 0, %s56
      %s59 = sphi 0, %s58
      %s73 = sphi 0, %s59
      %s77 = sphi 0, %s77
      %s79 = sphi 0, %s77
      %s80 = sphi 0, %s79
      %s94 = sphi 0, %s80
      %s98 = sphi 0, %s98
      %s100 = sphi 0, %s98
      %s101 = sphi 0, %s100
      %s115 = sphi 0, %s101
      %s119 = sphi 0, %s119
      %s121 = sphi 0, %s119
      %s122 = sphi 0, %s121
      %s136 = sphi 0, %s122
      %s140 = sphi 0, %s140
      %s142 = sphi 0, %s140
      %s143 = sphi 0, %s142
      %s157 = sphi 0, %s143
      %s161 = sphi 0, %s161
      %s163 = sphi 0, %s161
      %s164 = sphi 0, %s163
      %s178 = sphi 0, %s164
      %s182 = sphi 0, %s182
      %s184 = sphi 0, %s182
      %s185 = sphi 0, %s184
      %s199 = sphi 0, %s185
      %s203 = sphi 0, %s203
      %s205 = sphi 0, %s203
      %s206 = sphi 0, %s205
      %s220 = sphi 0, %s206
      %s224 = sphi 0, %s224
      %s226 = sphi 0, %s224
      %s227 = sphi 0, %s226
      %s241 = sphi 0, %s227
      %s245 = sphi 0, %s245
      %s247 = sphi 0, %s245
      %s248 = sphi 0, %s247
      %s262 = sphi 0, %s248
      %s266 = sphi 0, %s266
      %s268 = sphi 0, %s266
      %s269 = sphi 0, %s268
      %s283 = sphi 0, %s269
      %s287 = sphi 0, %s287
      %s289 = sphi 0, %s287
      %s290 = sphi 0, %s289
      %s304 = sphi 0, %s290
      %s310 = sphi 0, %s312
      %s313 = sphi 0, %s310
      %s314 = sphi 0, %s313
      %s330 = sphi 0, %s314
    $region4: #{_lambda_.1} parent=1 // loop_header_branch
      %25 = sbr.rel (%p23) target = $region8
    $region5: #{_lambda_.1} parent=1 // loop_body
      %s27 = ssub.s32 %s22, 1
      %s28 = ssub.s32 %s22, 2
      %s29 = sadd.s32 %s22, 1
      %s30 = ssub.s32 %s22, %s29
      %p31 = scmp.eq.s32.totalorder %s30, 0
      %s33 = sadd.s32 %s32, 1
      %s34 = scalar_select %p31, %s32, %s33
      %p37 = pneg %p31
      %p38 = scmp.eq.s32.totalorder %s22, 1
      %p39 = por %p37, %p38
      %p40 = scmp.ne.s32.totalorder %s32, %s35
      %p41 = scmp.eq.s32.totalorder %s22, 0
      %p42 = por %p40, %p41
      %p43 = scmp.ne.s32.totalorder %s32, %s35
      %p44 = scmp.eq.s32.totalorder %s27, 1
      %p45 = por %p43, %p44
      %p46 = scmp.ne.s32.totalorder %s35, %s36
      %p47 = scmp.eq.s32.totalorder %s27, 0
      %p48 = por %p46, %p47
      %p49 = scmp.ne.s32.totalorder %s35, %s36
      %p50 = scmp.eq.s32.totalorder %s28, 1
      %p51 = por %p49, %p50
      %p53 = scmp.ne.s32.totalorder %s36, %s52
      %p54 = scmp.eq.s32.totalorder %s28, 0
      %p55 = por %p53, %p54
      %s57 = sadd.s32 %s56, 1
      %p60 = scmp.eq.s32.totalorder %s22, 1
      %p61 = scmp.ne.s32.totalorder %s56, %s58
      %p62 = scmp.eq.s32.totalorder %s22, 0
      %p63 = por %p61, %p62
      %p64 = scmp.ne.s32.totalorder %s56, %s58
      %p65 = scmp.eq.s32.totalorder %s27, 1
      %p66 = por %p64, %p65
      %p67 = scmp.ne.s32.totalorder %s58, %s59
      %p68 = scmp.eq.s32.totalorder %s27, 0
      %p69 = por %p67, %p68
      %p70 = scmp.ne.s32.totalorder %s58, %s59
      %p71 = scmp.eq.s32.totalorder %s28, 1
      %p72 = por %p70, %p71
      %p74 = scmp.ne.s32.totalorder %s59, %s73
      %p75 = scmp.eq.s32.totalorder %s28, 0
      %p76 = por %p74, %p75
      %s78 = sadd.s32 %s77, 1
      %p81 = scmp.eq.s32.totalorder %s22, 1
      %p82 = scmp.ne.s32.totalorder %s77, %s79
      %p83 = scmp.eq.s32.totalorder %s22, 0
      %p84 = por %p82, %p83
      %p85 = scmp.ne.s32.totalorder %s77, %s79
      %p86 = scmp.eq.s32.totalorder %s27, 1
      %p87 = por %p85, %p86
      %p88 = scmp.ne.s32.totalorder %s79, %s80
      %p89 = scmp.eq.s32.totalorder %s27, 0
      %p90 = por %p88, %p89
      %p91 = scmp.ne.s32.totalorder %s79, %s80
      %p92 = scmp.eq.s32.totalorder %s28, 1
      %p93 = por %p91, %p92
      %p95 = scmp.ne.s32.totalorder %s80, %s94
      %p96 = scmp.eq.s32.totalorder %s28, 0
      %p97 = por %p95, %p96
      %s99 = sadd.s32 %s98, 1
      %p102 = scmp.eq.s32.totalorder %s22, 1
      %p103 = scmp.ne.s32.totalorder %s98, %s100
      %p104 = scmp.eq.s32.totalorder %s22, 0
      %p105 = por %p103, %p104
      %p106 = scmp.ne.s32.totalorder %s98, %s100
      %p107 = scmp.eq.s32.totalorder %s27, 1
      %p108 = por %p106, %p107
      %p109 = scmp.ne.s32.totalorder %s100, %s101
      %p110 = scmp.eq.s32.totalorder %s27, 0
      %p111 = por %p109, %p110
      %p112 = scmp.ne.s32.totalorder %s100, %s101
      %p113 = scmp.eq.s32.totalorder %s28, 1
      %p114 = por %p112, %p113
      %p116 = scmp.ne.s32.totalorder %s101, %s115
      %p117 = scmp.eq.s32.totalorder %s28, 0
      %p118 = por %p116, %p117
      %s120 = sadd.s32 %s119, 1
      %p123 = scmp.eq.s32.totalorder %s22, 1
      %p124 = scmp.ne.s32.totalorder %s119, %s121
      %p125 = scmp.eq.s32.totalorder %s22, 0
      %p126 = por %p124, %p125
      %p127 = scmp.ne.s32.totalorder %s119, %s121
      %p128 = scmp.eq.s32.totalorder %s27, 1
      %p129 = por %p127, %p128
      %p130 = scmp.ne.s32.totalorder %s121, %s122
      %p131 = scmp.eq.s32.totalorder %s27, 0
      %p132 = por %p130, %p131
      %p133 = scmp.ne.s32.totalorder %s121, %s122
      %p134 = scmp.eq.s32.totalorder %s28, 1
      %p135 = por %p133, %p134
      %p137 = scmp.ne.s32.totalorder %s122, %s136
      %p138 = scmp.eq.s32.totalorder %s28, 0
      %p139 = por %p137, %p138
      %s141 = sadd.s32 %s140, 1
      %p144 = scmp.eq.s32.totalorder %s22, 1
      %p145 = scmp.ne.s32.totalorder %s140, %s142
      %p146 = scmp.eq.s32.totalorder %s22, 0
      %p147 = por %p145, %p146
      %p148 = scmp.ne.s32.totalorder %s140, %s142
      %p149 = scmp.eq.s32.totalorder %s27, 1
      %p150 = por %p148, %p149
      %p151 = scmp.ne.s32.totalorder %s142, %s143
      %p152 = scmp.eq.s32.totalorder %s27, 0
      %p153 = por %p151, %p152
      %p154 = scmp.ne.s32.totalorder %s142, %s143
      %p155 = scmp.eq.s32.totalorder %s28, 1
      %p156 = por %p154, %p155
      %p158 = scmp.ne.s32.totalorder %s143, %s157
      %p159 = scmp.eq.s32.totalorder %s28, 0
      %p160 = por %p158, %p159
      %s162 = sadd.s32 %s161, 1
      %p165 = scmp.eq.s32.totalorder %s22, 1
      %p166 = scmp.ne.s32.totalorder %s161, %s163
      %p167 = scmp.eq.s32.totalorder %s22, 0
      %p168 = por %p166, %p167
      %p169 = scmp.ne.s32.totalorder %s161, %s163
      %p170 = scmp.eq.s32.totalorder %s27, 1
      %p171 = por %p169, %p170
      %p172 = scmp.ne.s32.totalorder %s163, %s164
      %p173 = scmp.eq.s32.totalorder %s27, 0
      %p174 = por %p172, %p173
      %p175 = scmp.ne.s32.totalorder %s163, %s164
      %p176 = scmp.eq.s32.totalorder %s28, 1
      %p177 = por %p175, %p176
      %p179 = scmp.ne.s32.totalorder %s164, %s178
      %p180 = scmp.eq.s32.totalorder %s28, 0
      %p181 = por %p179, %p180
      %s183 = sadd.s32 %s182, 1
      %p186 = scmp.eq.s32.totalorder %s22, 1
      %p187 = scmp.ne.s32.totalorder %s182, %s184
      %p188 = scmp.eq.s32.totalorder %s22, 0
      %p189 = por %p187, %p188
      %p190 = scmp.ne.s32.totalorder %s182, %s184
      %p191 = scmp.eq.s32.totalorder %s27, 1
      %p192 = por %p190, %p191
      %p193 = scmp.ne.s32.totalorder %s184, %s185
      %p194 = scmp.eq.s32.totalorder %s27, 0
      %p195 = por %p193, %p194
      %p196 = scmp.ne.s32.totalorder %s184, %s185
      %p197 = scmp.eq.s32.totalorder %s28, 1
      %p198 = por %p196, %p197
      %p200 = scmp.ne.s32.totalorder %s185, %s199
      %p201 = scmp.eq.s32.totalorder %s28, 0
      %p202 = por %p200, %p201
      %s204 = sadd.s32 %s203, 1
      %p207 = scmp.eq.s32.totalorder %s22, 1
      %p208 = scmp.ne.s32.totalorder %s203, %s205
      %p209 = scmp.eq.s32.totalorder %s22, 0
      %p210 = por %p208, %p209
      %p211 = scmp.ne.s32.totalorder %s203, %s205
      %p212 = scmp.eq.s32.totalorder %s27, 1
      %p213 = por %p211, %p212
      %p214 = scmp.ne.s32.totalorder %s205, %s206
      %p215 = scmp.eq.s32.totalorder %s27, 0
      %p216 = por %p214, %p215
      %p217 = scmp.ne.s32.totalorder %s205, %s206
      %p218 = scmp.eq.s32.totalorder %s28, 1
      %p219 = por %p217, %p218
      %p221 = scmp.ne.s32.totalorder %s206, %s220
      %p222 = scmp.eq.s32.totalorder %s28, 0
      %p223 = por %p221, %p222
      %s225 = sadd.s32 %s224, 1
      %p228 = scmp.eq.s32.totalorder %s22, 1
      %p229 = scmp.ne.s32.totalorder %s224, %s226
      %p230 = scmp.eq.s32.totalorder %s22, 0
      %p231 = por %p229, %p230
      %p232 = scmp.ne.s32.totalorder %s224, %s226
      %p233 = scmp.eq.s32.totalorder %s27, 1
      %p234 = por %p232, %p233
      %p235 = scmp.ne.s32.totalorder %s226, %s227
      %p236 = scmp.eq.s32.totalorder %s27, 0
      %p237 = por %p235, %p236
      %p238 = scmp.ne.s32.totalorder %s226, %s227
      %p239 = scmp.eq.s32.totalorder %s28, 1
      %p240 = por %p238, %p239
      %p242 = scmp.ne.s32.totalorder %s227, %s241
      %p243 = scmp.eq.s32.totalorder %s28, 0
      %p244 = por %p242, %p243
      %s246 = sadd.s32 %s245, 1
      %p249 = scmp.eq.s32.totalorder %s22, 1
      %p250 = scmp.ne.s32.totalorder %s245, %s247
      %p251 = scmp.eq.s32.totalorder %s22, 0
      %p252 = por %p250, %p251
      %p253 = scmp.ne.s32.totalorder %s245, %s247
      %p254 = scmp.eq.s32.totalorder %s27, 1
      %p255 = por %p253, %p254
      %p256 = scmp.ne.s32.totalorder %s247, %s248
      %p257 = scmp.eq.s32.totalorder %s27, 0
      %p258 = por %p256, %p257
      %p259 = scmp.ne.s32.totalorder %s247, %s248
      %p260 = scmp.eq.s32.totalorder %s28, 1
      %p261 = por %p259, %p260
      %p263 = scmp.ne.s32.totalorder %s248, %s262
      %p264 = scmp.eq.s32.totalorder %s28, 0
      %p265 = por %p263, %p264
      %s267 = sadd.s32 %s266, 1
      %p270 = scmp.eq.s32.totalorder %s22, 1
      %p271 = scmp.ne.s32.totalorder %s266, %s268
      %p272 = scmp.eq.s32.totalorder %s22, 0
      %p273 = por %p271, %p272
      %p274 = scmp.ne.s32.totalorder %s266, %s268
      %p275 = scmp.eq.s32.totalorder %s27, 1
      %p276 = por %p274, %p275
      %p277 = scmp.ne.s32.totalorder %s268, %s269
      %p278 = scmp.eq.s32.totalorder %s27, 0
      %p279 = por %p277, %p278
      %p280 = scmp.ne.s32.totalorder %s268, %s269
      %p281 = scmp.eq.s32.totalorder %s28, 1
      %p282 = por %p280, %p281
      %p284 = scmp.ne.s32.totalorder %s269, %s283
      %p285 = scmp.eq.s32.totalorder %s28, 0
      %p286 = por %p284, %p285
      %s288 = sadd.s32 %s287, 1
      %p291 = scmp.eq.s32.totalorder %s22, 1
      %p292 = scmp.ne.s32.totalorder %s287, %s289
      %p293 = scmp.eq.s32.totalorder %s22, 0
      %p294 = por %p292, %p293
      %p295 = scmp.ne.s32.totalorder %s287, %s289
      %p296 = scmp.eq.s32.totalorder %s27, 1
      %p297 = por %p295, %p296
      %p298 = scmp.ne.s32.totalorder %s289, %s290
      %p299 = scmp.eq.s32.totalorder %s27, 0
      %p300 = por %p298, %p299
      %p301 = scmp.ne.s32.totalorder %s289, %s290
      %p302 = scmp.eq.s32.totalorder %s28, 1
      %p303 = por %p301, %p302
      %p305 = scmp.ne.s32.totalorder %s290, %s304
      %p306 = scmp.eq.s32.totalorder %s28, 0
      %p307 = por %p305, %p306
      %s308 = ssub.s32 %s22, %s29
      %p309 = scmp.eq.s32.totalorder %s308, 0
      %s311 = sadd.s32 %s310, 1
      %s312 = scalar_select %p309, %s310, %s311
      %p315 = pneg %p309
      %p316 = scmp.eq.s32.totalorder %s22, 1
      %p317 = por %p315, %p316
      %p318 = scmp.ne.s32.totalorder %s310, %s313
      %p319 = scmp.eq.s32.totalorder %s22, 0
      %p320 = por %p318, %p319
      %p321 = scmp.ne.s32.totalorder %s310, %s313
      %p322 = scmp.eq.s32.totalorder %s27, 1
      %p323 = por %p321, %p322
      %p324 = scmp.ne.s32.totalorder %s313, %s314
      %p325 = scmp.eq.s32.totalorder %s27, 0
      %p326 = por %p324, %p325
      %p327 = scmp.ne.s32.totalorder %s313, %s314
      %p328 = scmp.eq.s32.totalorder %s28, 1
      %p329 = por %p327, %p328
      %p331 = scmp.ne.s32.totalorder %s314, %s330
      %p332 = scmp.eq.s32.totalorder %s28, 0
      %p333 = por %p331, %p332
      %p334 = scmp.le.s32.totalorder 1, %s22
      %p335 = scmp.lt.s32.totalorder %s22, 3
      %p336 = pnand %p334, %p335
      %p337 = pneg %p336
      // Predicated region
      $region9: #{_lambda_.1} parent=5 // pred_check
        _
      $region10: #{_lambda_.1} parent=5 // pred_check_branch
        %339 = sbr.rel (%p336) target = $region12
      $region11: #{_lambda_.1} parent=5 // pred_region
        %s340 = ssub.s32 %s22, 1
        // Predicated region
        $region13: #{_lambda_.1} parent=11 // pred_check
          %p341 = pneg %p69
        $region14: #{_lambda_.1} parent=11 // pred_check_branch
          %343 = sbr.rel (%p341) target = $region16
        $region15: #{_lambda_.1} parent=11 // pred_region
          _
        $region16: #{_lambda_.1} parent=11 // pred_fallthru
          _
        // Predicated region
        $region17: #{_lambda_.1} parent=11 // pred_check
          %p344 = pneg %p90
        $region18: #{_lambda_.1} parent=11 // pred_check_branch
          %346 = sbr.rel (%p344) target = $region20
        $region19: #{_lambda_.1} parent=11 // pred_region
          _
        $region20: #{_lambda_.1} parent=11 // pred_fallthru
          _
        // Predicated region
        $region21: #{_lambda_.1} parent=11 // pred_check
          %p347 = pneg %p111
        $region22: #{_lambda_.1} parent=11 // pred_check_branch
          %349 = sbr.rel (%p347) target = $region24
        $region23: #{_lambda_.1} parent=11 // pred_region
          _
        $region24: #{_lambda_.1} parent=11 // pred_fallthru
          _
        // Predicated region
        $region25: #{_lambda_.1} parent=11 // pred_check
          %p350 = pneg %p132
        $region26: #{_lambda_.1} parent=11 // pred_check_branch
          %352 = sbr.rel (%p350) target = $region28
        $region27: #{_lambda_.1} parent=11 // pred_region
          _
        $region28: #{_lambda_.1} parent=11 // pred_fallthru
          _
        // Predicated region
        $region29: #{_lambda_.1} parent=11 // pred_check
          %p353 = pneg %p153
        $region30: #{_lambda_.1} parent=11 // pred_check_branch
          %355 = sbr.rel (%p353) target = $region32
        $region31: #{_lambda_.1} parent=11 // pred_region
          _
        $region32: #{_lambda_.1} parent=11 // pred_fallthru
          _
        // Predicated region
        $region33: #{_lambda_.1} parent=11 // pred_check
          %p356 = pneg %p174
        $region34: #{_lambda_.1} parent=11 // pred_check_branch
          %358 = sbr.rel (%p356) target = $region36
        $region35: #{_lambda_.1} parent=11 // pred_region
          _
        $region36: #{_lambda_.1} parent=11 // pred_fallthru
          _
        // Predicated region
        $region37: #{_lambda_.1} parent=11 // pred_check
          %p359 = pneg %p195
        $region38: #{_lambda_.1} parent=11 // pred_check_branch
          %361 = sbr.rel (%p359) target = $region40
        $region39: #{_lambda_.1} parent=11 // pred_region
          _
        $region40: #{_lambda_.1} parent=11 // pred_fallthru
          _
        // Predicated region
        $region41: #{_lambda_.1} parent=11 // pred_check
          %p362 = pneg %p216
        $region42: #{_lambda_.1} parent=11 // pred_check_branch
          %364 = sbr.rel (%p362) target = $region44
        $region43: #{_lambda_.1} parent=11 // pred_region
          _
        $region44: #{_lambda_.1} parent=11 // pred_fallthru
          _
        // Predicated region
        $region45: #{_lambda_.1} parent=11 // pred_check
          %p365 = pneg %p237
        $region46: #{_lambda_.1} parent=11 // pred_check_branch
          %367 = sbr.rel (%p365) target = $region48
        $region47: #{_lambda_.1} parent=11 // pred_region
          _
        $region48: #{_lambda_.1} parent=11 // pred_fallthru
          _
        // Predicated region
        $region49: #{_lambda_.1} parent=11 // pred_check
          %p368 = pneg %p258
        $region50: #{_lambda_.1} parent=11 // pred_check_branch
          %370 = sbr.rel (%p368) target = $region52
        $region51: #{_lambda_.1} parent=11 // pred_region
          _
        $region52: #{_lambda_.1} parent=11 // pred_fallthru
          _
        // Predicated region
        $region53: #{_lambda_.1} parent=11 // pred_check
          %p371 = pneg %p279
        $region54: #{_lambda_.1} parent=11 // pred_check_branch
          %373 = sbr.rel (%p371) target = $region56
        $region55: #{_lambda_.1} parent=11 // pred_region
          _
        $region56: #{_lambda_.1} parent=11 // pred_fallthru
          _
        // Predicated region
        $region57: #{_lambda_.1} parent=11 // pred_check
          %p374 = pneg %p300
        $region58: #{_lambda_.1} parent=11 // pred_check_branch
          %376 = sbr.rel (%p374) target = $region60
        $region59: #{_lambda_.1} parent=11 // pred_region
          _
        $region60: #{_lambda_.1} parent=11 // pred_fallthru
          _
      $region12: #{_lambda_.1} parent=5 // pred_fallthru
        _
      %p377 = scmp.lt.s32.totalorder %s22, 2
      // Predicated region
      $region61: #{_lambda_.1} parent=5 // pred_check
        %p378 = pneg %p377
      $region62: #{_lambda_.1} parent=5 // pred_check_branch
        %380 = sbr.rel (%p378) target = $region64
      $region63: #{_lambda_.1} parent=5 // pred_region
        // Predicated region
        $region65: #{_lambda_.1} parent=63 // pred_check
          %p381 = pneg %p42
        $region66: #{_lambda_.1} parent=63 // pred_check_branch
          %383 = sbr.rel (%p381) target = $region68
        $region67: #{_lambda_.1} parent=63 // pred_region
          %p384 = scmp.lt.s32.totalorder %s22, 1
          %s385 = scalar_select %p384, %s22, 1
          %s386 = smul.addr %s385, 2
          %s387 = smul.addr %s386, 8
          %s388 = scalar_lea.vmem %s0, %s387
        $region68: #{_lambda_.1} parent=63 // pred_fallthru
          _
      $region64: #{_lambda_.1} parent=5 // pred_fallthru
        _
      %p389 = scmp.le.s32.totalorder 1, %s22
      %p390 = scmp.lt.s32.totalorder %s22, 3
      %p391 = pnand %p389, %p390
      %p392 = pneg %p391
      // Predicated region
      $region69: #{_lambda_.1} parent=5 // pred_check
        _
      $region70: #{_lambda_.1} parent=5 // pred_check_branch
        %394 = sbr.rel (%p391) target = $region72
      $region71: #{_lambda_.1} parent=5 // pred_region
        %s395 = ssub.s32 %s22, 1
        %p396 = scmp.lt.s32.totalorder %s27, 1
        %s397 = scalar_select %p396, %s27, 1
        %s398 = smul.addr %s397, 2
        %s399 = smul.addr %s398, 8
        %s400 = scalar_lea.vmem %s0, %s399
        %p401 = pneg %p48
        %p402 = pneg %p45
        %p403 = pneg %p69
        %p404 = pneg %p66
        %p405 = pneg %p90
        %p406 = pneg %p87
        %p407 = pneg %p111
        %p408 = pneg %p108
        %p409 = pneg %p132
        %p410 = pneg %p129
        %p411 = pneg %p153
        %p412 = pneg %p150
        %p413 = pneg %p174
        %p414 = pneg %p171
        %p415 = pneg %p195
        %p416 = pneg %p192
        %p417 = pneg %p216
        %p418 = pneg %p213
        %p419 = pneg %p237
        %p420 = pneg %p234
        %p421 = pneg %p258
        %p422 = pneg %p255
        %p423 = pneg %p279
        %p424 = pneg %p276
        %p425 = pneg %p300
        %p426 = pneg %p297
        %p427 = pneg %p326
        %p428 = pneg %p323
        %s429 = sand.u32 %s313, 1
        %s430 = scalar_lea.sflag [#allocation4], %s429
        %s431 = sand.u32 %s313, 1
        %s432 = smul.addr %s431, 64
        %s433 = scalar_lea.vmem [#allocation3], %s432
        %p434 = scmp.lt.s32.totalorder %s27, 1
        %s435 = scalar_select %p434, %s27, 1
        %s436 = smul.addr %s435, 2
        %s437 = smul.addr %s436, 8
        %s438 = scalar_lea.vmem %s0, %s437
        %v439 = vld [vmem:[%s438] sm:$0xff]
        %v440 = vld [vmem:[%s438 + $0x8] sm:$0xff]
        %441 = vst [vmem:[#allocation2] sm:$0x1] 0.0
        %442 = vst [vmem:[#allocation2 + $0x11] sm:$0x1] 0.0
        %443 = vst [vmem:[#allocation2 + $0x1] sm:$0xff] %v439
        %444 = vst [vmem:[#allocation2 + $0x9] sm:$0xff] %v440
        %v445 = vld [vmem:[#allocation2] sm:$0xff]
        %v446 = vld [vmem:[#allocation2 + $0x8] sm:$0xff]
        %v447 = vld [vmem:[%s1] sm:$0xff]
        %v448 = vld [vmem:[%s1 + $0x8] sm:$0xff]
        %v449 = vld [vmem:[%s1 + $0x10] sm:$0xff]
        %v450 = vld [vmem:[%s1 + $0x18] sm:$0xff]
        %v451 = vld [vmem:[%s1 + $0x20] sm:$0xff]
        %v452 = vld [vmem:[%s1 + $0x28] sm:$0xff]
        %v453 = vld [vmem:[%s1 + $0x30] sm:$0xff]
        %v454 = vld [vmem:[%s1 + $0x38] sm:$0xff]
        %v455 = vld [vmem:[%s1 + $0x40] sm:$0xff]
        %v456 = vld [vmem:[%s1 + $0x48] sm:$0xff]
        %v457 = vld [vmem:[%s1 + $0x50] sm:$0xff]
        %v458 = vld [vmem:[%s1 + $0x58] sm:$0xff]
        %v459 = vld [vmem:[%s1 + $0x60] sm:$0xff]
        %v460 = vld [vmem:[%s1 + $0x68] sm:$0xff]
        %v461 = vld [vmem:[%s1 + $0x70] sm:$0xff]
        %v462 = vld [vmem:[%s1 + $0x78] sm:$0xff]
        %v463 = vld [vmem:[#allocation2 + $0x1] sm:$0xff]
        %v464 = vld [vmem:[#allocation2 + $0x9] sm:$0xff]
        %s465 = scalar_lea.vmem %s1, 128
        %v466 = vld [vmem:[%s465] sm:$0xff]
        %v467 = vld [vmem:[%s465 + $0x8] sm:$0xff]
        %v468 = vld [vmem:[%s465 + $0x10] sm:$0xff]
        %v469 = vld [vmem:[%s465 + $0x18] sm:$0xff]
        %v470 = vld [vmem:[%s465 + $0x20] sm:$0xff]
        %v471 = vld [vmem:[%s465 + $0x28] sm:$0xff]
        %v472 = vld [vmem:[%s465 + $0x30] sm:$0xff]
        %v473 = vld [vmem:[%s465 + $0x38] sm:$0xff]
        %v474 = vld [vmem:[%s465 + $0x40] sm:$0xff]
        %v475 = vld [vmem:[%s465 + $0x48] sm:$0xff]
        %v476 = vld [vmem:[%s465 + $0x50] sm:$0xff]
        %v477 = vld [vmem:[%s465 + $0x58] sm:$0xff]
        %v478 = vld [vmem:[%s465 + $0x60] sm:$0xff]
        %v479 = vld [vmem:[%s465 + $0x68] sm:$0xff]
        %v480 = vld [vmem:[%s465 + $0x70] sm:$0xff]
        %v481 = vld [vmem:[%s465 + $0x78] sm:$0xff]
        %482 = vmatpush.msra.mxu0 %v481
        %483 = vmatpush.msra.mxu0 %v480
        %484 = vmatpush.msra.mxu0 %v479
        %485 = vmatpush.msra.mxu0 %v478
        %486 = vmatpush.msra.mxu0 %v477
        %487 = vmatpush.msra.mxu0 %v476
        %488 = vmatpush.msra.mxu0 %v475
        %489 = vmatpush.msra.mxu0 %v474
        %490 = vmatpush.msra.mxu0 %v473
        %491 = vmatpush.msra.mxu0 %v472
        %492 = vmatpush.msra.mxu0 %v471
        %493 = vmatpush.msra.mxu0 %v470
        %494 = vmatpush.msra.mxu0 %v469
        %495 = vmatpush.msra.mxu0 %v468
        %496 = vmatpush.msra.mxu0 %v467
        %497 = vmatpush.msra.mxu0 %v466
        %498 = vmatmul.f32.gmra.mxu0 %v463
        %v499 = vpop.f32.mrf.mxu0
        %v500 = vadd.f32 0.0, %v499
        %501 = vmatmul.f32.gmra.mxu0 %v464
        %v502 = vpop.f32.mrf.mxu0
        %v503 = vadd.f32 0.0, %v502
        %504 = vdwg.mxu0
        %505 = vmatpush.msra.mxu0 %v462
        %506 = vmatpush.msra.mxu0 %v461
        %507 = vmatpush.msra.mxu0 %v460
        %508 = vmatpush.msra.mxu0 %v459
        %509 = vmatpush.msra.mxu0 %v458
        %510 = vmatpush.msra.mxu0 %v457
        %511 = vmatpush.msra.mxu0 %v456
        %512 = vmatpush.msra.mxu0 %v455
        %513 = vmatpush.msra.mxu0 %v454
        %514 = vmatpush.msra.mxu0 %v453
        %515 = vmatpush.msra.mxu0 %v452
        %516 = vmatpush.msra.mxu0 %v451
        %517 = vmatpush.msra.mxu0 %v450
        %518 = vmatpush.msra.mxu0 %v449
        %519 = vmatpush.msra.mxu0 %v448
        %520 = vmatpush.msra.mxu0 %v447
        %521 = vmatmul.f32.gmra.mxu0 %v445
        %v522 = vpop.f32.mrf.mxu0
        %v523 = vadd.f32 %v500, %v522
        %524 = vmatmul.f32.gmra.mxu0 %v446
        %v525 = vpop.f32.mrf.mxu0
        %v526 = vadd.f32 %v503, %v525
        %527 = vdwg.mxu0
        %v528 = vld [vmem:[#allocation2 + $0x2] sm:$0xff]
        %v529 = vld [vmem:[#allocation2 + $0xa] sm:$0xff]
        %s530 = scalar_lea.vmem %s1, 256
        %v531 = vld [vmem:[%s530] sm:$0xff]
        %v532 = vld [vmem:[%s530 + $0x8] sm:$0xff]
        %v533 = vld [vmem:[%s530 + $0x10] sm:$0xff]
        %v534 = vld [vmem:[%s530 + $0x18] sm:$0xff]
        %v535 = vld [vmem:[%s530 + $0x20] sm:$0xff]
        %v536 = vld [vmem:[%s530 + $0x28] sm:$0xff]
        %v537 = vld [vmem:[%s530 + $0x30] sm:$0xff]
        %v538 = vld [vmem:[%s530 + $0x38] sm:$0xff]
        %v539 = vld [vmem:[%s530 + $0x40] sm:$0xff]
        %v540 = vld [vmem:[%s530 + $0x48] sm:$0xff]
        %v541 = vld [vmem:[%s530 + $0x50] sm:$0xff]
        %v542 = vld [vmem:[%s530 + $0x58] sm:$0xff]
        %v543 = vld [vmem:[%s530 + $0x60] sm:$0xff]
        %v544 = vld [vmem:[%s530 + $0x68] sm:$0xff]
        %v545 = vld [vmem:[%s530 + $0x70] sm:$0xff]
        %v546 = vld [vmem:[%s530 + $0x78] sm:$0xff]
        %547 = vmatpush.msra.mxu0 %v546
        %548 = vmatpush.msra.mxu0 %v545
        %549 = vmatpush.msra.mxu0 %v544
        %550 = vmatpush.msra.mxu0 %v543
        %551 = vmatpush.msra.mxu0 %v542
        %552 = vmatpush.msra.mxu0 %v541
        %553 = vmatpush.msra.mxu0 %v540
        %554 = vmatpush.msra.mxu0 %v539
        %555 = vmatpush.msra.mxu0 %v538
        %556 = vmatpush.msra.mxu0 %v537
        %557 = vmatpush.msra.mxu0 %v536
        %558 = vmatpush.msra.mxu0 %v535
        %559 = vmatpush.msra.mxu0 %v534
        %560 = vmatpush.msra.mxu0 %v533
        %561 = vmatpush.msra.mxu0 %v532
        %562 = vmatpush.msra.mxu0 %v531
        %563 = vmatmul.f32.gmra.mxu0 %v528
        %v564 = vpop.f32.mrf.mxu0
        %v565 = vadd.f32 0.0, %v564
        %566 = vmatmul.f32.gmra.mxu0 %v529
        %v567 = vpop.f32.mrf.mxu0
        %v568 = vadd.f32 0.0, %v567
        %569 = vdwg.mxu0
        %v570 = vadd.f32 %v523, %v565
        %v571 = vadd.f32 %v526, %v568
        %v572 = vld [vmem:[%s2] sm:$0x1]
        %v574 = vperm.slane %v572, 0
        %v576 = vadd.f32 %v570, %v574
        %v577 = vadd.f32 %v571, %v574
        %578 = vst [vmem:[#allocation2] sm:$0x1] 0.0
        %579 = vst [vmem:[#allocation2 + $0x11] sm:$0x1] 0.0
        %580 = vst [vmem:[#allocation2 + $0x1] sm:$0xff] %v576
        %581 = vst [vmem:[#allocation2 + $0x9] sm:$0xff] %v577
        %v582 = vld [vmem:[#allocation2] sm:$0xff]
        %v583 = vld [vmem:[#allocation2 + $0x8] sm:$0xff]
        %v584 = vld [vmem:[%s3] sm:$0xff]
        %v585 = vld [vmem:[%s3 + $0x8] sm:$0xff]
        %v586 = vld [vmem:[%s3 + $0x10] sm:$0xff]
        %v587 = vld [vmem:[%s3 + $0x18] sm:$0xff]
        %v588 = vld [vmem:[%s3 + $0x20] sm:$0xff]
        %v589 = vld [vmem:[%s3 + $0x28] sm:$0xff]
        %v590 = vld [vmem:[%s3 + $0x30] sm:$0xff]
        %v591 = vld [vmem:[%s3 + $0x38] sm:$0xff]
        %v592 = vld [vmem:[%s3 + $0x40] sm:$0xff]
        %v593 = vld [vmem:[%s3 + $0x48] sm:$0xff]
        %v594 = vld [vmem:[%s3 + $0x50] sm:$0xff]
        %v595 = vld [vmem:[%s3 + $0x58] sm:$0xff]
        %v596 = vld [vmem:[%s3 + $0x60] sm:$0xff]
        %v597 = vld [vmem:[%s3 + $0x68] sm:$0xff]
        %v598 = vld [vmem:[%s3 + $0x70] sm:$0xff]
        %v599 = vld [vmem:[%s3 + $0x78] sm:$0xff]
        %v600 = vld [vmem:[#allocation2 + $0x1] sm:$0xff]
        %v601 = vld [vmem:[#allocation2 + $0x9] sm:$0xff]
        %s602 = scalar_lea.vmem %s3, 128
        %v603 = vld [vmem:[%s602] sm:$0xff]
        %v604 = vld [vmem:[%s602 + $0x8] sm:$0xff]
        %v605 = vld [vmem:[%s602 + $0x10] sm:$0xff]
        %v606 = vld [vmem:[%s602 + $0x18] sm:$0xff]
        %v607 = vld [vmem:[%s602 + $0x20] sm:$0xff]
        %v608 = vld [vmem:[%s602 + $0x28] sm:$0xff]
        %v609 = vld [vmem:[%s602 + $0x30] sm:$0xff]
        %v610 = vld [vmem:[%s602 + $0x38] sm:$0xff]
        %v611 = vld [vmem:[%s602 + $0x40] sm:$0xff]
        %v612 = vld [vmem:[%s602 + $0x48] sm:$0xff]
        %v613 = vld [vmem:[%s602 + $0x50] sm:$0xff]
        %v614 = vld [vmem:[%s602 + $0x58] sm:$0xff]
        %v615 = vld [vmem:[%s602 + $0x60] sm:$0xff]
        %v616 = vld [vmem:[%s602 + $0x68] sm:$0xff]
        %v617 = vld [vmem:[%s602 + $0x70] sm:$0xff]
        %v618 = vld [vmem:[%s602 + $0x78] sm:$0xff]
        %619 = vmatpush.msra.mxu0 %v618
        %620 = vmatpush.msra.mxu0 %v617
        %621 = vmatpush.msra.mxu0 %v616
        %622 = vmatpush.msra.mxu0 %v615
        %623 = vmatpush.msra.mxu0 %v614
        %624 = vmatpush.msra.mxu0 %v613
        %625 = vmatpush.msra.mxu0 %v612
        %626 = vmatpush.msra.mxu0 %v611
        %627 = vmatpush.msra.mxu0 %v610
        %628 = vmatpush.msra.mxu0 %v609
        %629 = vmatpush.msra.mxu0 %v608
        %630 = vmatpush.msra.mxu0 %v607
        %631 = vmatpush.msra.mxu0 %v606
        %632 = vmatpush.msra.mxu0 %v605
        %633 = vmatpush.msra.mxu0 %v604
        %634 = vmatpush.msra.mxu0 %v603
        %635 = vmatmul.f32.gmra.mxu0 %v600
        %v636 = vpop.f32.mrf.mxu0
        %v637 = vadd.f32 0.0, %v636
        %638 = vmatmul.f32.gmra.mxu0 %v601
        %v639 = vpop.f32.mrf.mxu0
        %v640 = vadd.f32 0.0, %v639
        %641 = vdwg.mxu0
        %642 = vmatpush.msra.mxu0 %v599
        %643 = vmatpush.msra.mxu0 %v598
        %644 = vmatpush.msra.mxu0 %v597
        %645 = vmatpush.msra.mxu0 %v596
        %646 = vmatpush.msra.mxu0 %v595
        %647 = vmatpush.msra.mxu0 %v594
        %648 = vmatpush.msra.mxu0 %v593
        %649 = vmatpush.msra.mxu0 %v592
        %650 = vmatpush.msra.mxu0 %v591
        %651 = vmatpush.msra.mxu0 %v590
        %652 = vmatpush.msra.mxu0 %v589
        %653 = vmatpush.msra.mxu0 %v588
        %654 = vmatpush.msra.mxu0 %v587
        %655 = vmatpush.msra.mxu0 %v586
        %656 = vmatpush.msra.mxu0 %v585
        %657 = vmatpush.msra.mxu0 %v584
        %658 = vmatmul.f32.gmra.mxu0 %v582
        %v659 = vpop.f32.mrf.mxu0
        %v660 = vadd.f32 %v637, %v659
        %661 = vmatmul.f32.gmra.mxu0 %v583
        %v662 = vpop.f32.mrf.mxu0
        %v663 = vadd.f32 %v640, %v662
        %664 = vdwg.mxu0
        %v665 = vld [vmem:[#allocation2 + $0x2] sm:$0xff]
        %v666 = vld [vmem:[#allocation2 + $0xa] sm:$0xff]
        %s667 = scalar_lea.vmem %s3, 256
        %v668 = vld [vmem:[%s667] sm:$0xff]
        %v669 = vld [vmem:[%s667 + $0x8] sm:$0xff]
        %v670 = vld [vmem:[%s667 + $0x10] sm:$0xff]
        %v671 = vld [vmem:[%s667 + $0x18] sm:$0xff]
        %v672 = vld [vmem:[%s667 + $0x20] sm:$0xff]
        %v673 = vld [vmem:[%s667 + $0x28] sm:$0xff]
        %v674 = vld [vmem:[%s667 + $0x30] sm:$0xff]
        %v675 = vld [vmem:[%s667 + $0x38] sm:$0xff]
        %v676 = vld [vmem:[%s667 + $0x40] sm:$0xff]
        %v677 = vld [vmem:[%s667 + $0x48] sm:$0xff]
        %v678 = vld [vmem:[%s667 + $0x50] sm:$0xff]
        %v679 = vld [vmem:[%s667 + $0x58] sm:$0xff]
        %v680 = vld [vmem:[%s667 + $0x60] sm:$0xff]
        %v681 = vld [vmem:[%s667 + $0x68] sm:$0xff]
        %v682 = vld [vmem:[%s667 + $0x70] sm:$0xff]
        %v683 = vld [vmem:[%s667 + $0x78] sm:$0xff]
        %684 = vmatpush.msra.mxu0 %v683
        %685 = vmatpush.msra.mxu0 %v682
        %686 = vmatpush.msra.mxu0 %v681
        %687 = vmatpush.msra.mxu0 %v680
        %688 = vmatpush.msra.mxu0 %v679
        %689 = vmatpush.msra.mxu0 %v678
        %690 = vmatpush.msra.mxu0 %v677
        %691 = vmatpush.msra.mxu0 %v676
        %692 = vmatpush.msra.mxu0 %v675
        %693 = vmatpush.msra.mxu0 %v674
        %694 = vmatpush.msra.mxu0 %v673
        %695 = vmatpush.msra.mxu0 %v672
        %696 = vmatpush.msra.mxu0 %v671
        %697 = vmatpush.msra.mxu0 %v670
        %698 = vmatpush.msra.mxu0 %v669
        %699 = vmatpush.msra.mxu0 %v668
        %700 = vmatmul.f32.gmra.mxu0 %v665
        %v701 = vpop.f32.mrf.mxu0
        %v702 = vadd.f32 0.0, %v701
        %703 = vmatmul.f32.gmra.mxu0 %v666
        %v704 = vpop.f32.mrf.mxu0
        %v705 = vadd.f32 0.0, %v704
        %706 = vdwg.mxu0
        %v707 = vadd.f32 %v660, %v702
        %v708 = vadd.f32 %v663, %v705
        %v709 = vld [vmem:[%s4] sm:$0x1]
        %v711 = vperm.slane %v709, 0
        %v713 = vadd.f32 %v707, %v711
        %v714 = vadd.f32 %v708, %v711
        %v715 = vmax.f32 %v713, 0.0
        %v716 = vmax.f32 %v714, 0.0
        %v717 = vld [vmem:[%s5] sm:$0xff]
        %v718 = vld [vmem:[%s5 + $0x8] sm:$0xff]
        %v719 = vld [vmem:[%s5 + $0x10] sm:$0xff]
        %v720 = vld [vmem:[%s5 + $0x18] sm:$0xff]
        %vm721 = vcmask 130048
        %v723 = vsel %vm721, %v717, 0
        %v726 = vsel %vm721, %v718, 0
        %v729 = vsel %vm721, %v719, 0
        %v732 = vsel %vm721, %v720, 0
        %734 = vmatpush.msra.mxu0 0.0
        %735 = vmatpush.msra.mxu0 0.0
        %736 = vmatpush.msra.mxu0 0.0
        %737 = vmatpush.msra.mxu0 0.0
        %738 = vmatpush.msra.mxu0 0.0
        %739 = vmatpush.msra.mxu0 0.0
        %740 = vmatpush.msra.mxu0 0.0
        %741 = vmatpush.msra.mxu0 0.0
        %742 = vmatpush.msra.mxu0 0.0
        %743 = vmatpush.msra.mxu0 0.0
        %744 = vmatpush.msra.mxu0 0.0
        %745 = vmatpush.msra.mxu0 0.0
        %746 = vmatpush.msra.mxu0 0.0
        %747 = vmatpush.msra.mxu0 0.0
        %748 = vmatpush.msra.mxu0 %v716
        %749 = vmatpush.msra.mxu0 %v715
        %750 = vmatmul.f32.gmra.mxu0 %v723
        %v751 = vpop.f32.mrf.mxu0
        %v752 = vadd.f32 0.0, %v751
        %753 = vmatmul.f32.gmra.mxu0 %v726
        %v754 = vpop.f32.mrf.mxu0
        %v755 = vadd.f32 0.0, %v754
        %756 = vmatmul.f32.gmra.mxu0 %v729
        %v757 = vpop.f32.mrf.mxu0
        %v758 = vadd.f32 0.0, %v757
        %759 = vmatmul.f32.gmra.mxu0 %v732
        %v760 = vpop.f32.mrf.mxu0
        %v761 = vadd.f32 0.0, %v760
        %762 = vdwg.mxu0
        %v763 = vld [vmem:[%s6] sm:$0xff]
        %v764 = vld [vmem:[%s6 + $0x8] sm:$0xff]
        %v765 = vld [vmem:[%s6 + $0x10] sm:$0xff]
        %v766 = vld [vmem:[%s6 + $0x18] sm:$0xff]
        %v767 = vld [vmem:[%s6 + $0x20] sm:$0xff]
        %v768 = vld [vmem:[%s6 + $0x28] sm:$0xff]
        %v769 = vld [vmem:[%s6 + $0x30] sm:$0xff]
        %v770 = vld [vmem:[%s6 + $0x38] sm:$0xff]
        %vm771 = vcmask 523264
        %v773 = vsel %vm771, %v752, 0
        %v776 = vsel %vm771, %v755, 0
        %v779 = vsel %vm771, %v758, 0
        %v782 = vsel %vm771, %v761, 0
        %784 = vmatpush.msra.mxu0 0.0
        %785 = vmatpush.msra.mxu0 0.0
        %786 = vmatpush.msra.mxu0 0.0
        %787 = vmatpush.msra.mxu0 0.0
        %788 = vmatpush.msra.mxu0 0.0
        %789 = vmatpush.msra.mxu0 0.0
        %790 = vmatpush.msra.mxu0 0.0
        %791 = vmatpush.msra.mxu0 0.0
        %792 = vmatpush.msra.mxu0 %v770
        %793 = vmatpush.msra.mxu0 %v769
        %794 = vmatpush.msra.mxu0 %v768
        %795 = vmatpush.msra.mxu0 %v767
        %796 = vmatpush.msra.mxu0 %v766
        %797 = vmatpush.msra.mxu0 %v765
        %798 = vmatpush.msra.mxu0 %v764
        %799 = vmatpush.msra.mxu0 %v763
        %800 = vmatmul.f32.gmra.mxu0 %v773
        %v801 = vpop.f32.mrf.mxu0
        %v802 = vadd.f32 0.0, %v801
        %803 = vmatmul.f32.gmra.mxu0 %v776
        %v804 = vpop.f32.mrf.mxu0
        %v805 = vadd.f32 0.0, %v804
        %806 = vmatmul.f32.gmra.mxu0 %v779
        %v807 = vpop.f32.mrf.mxu0
        %v808 = vadd.f32 0.0, %v807
        %809 = vmatmul.f32.gmra.mxu0 %v782
        %v810 = vpop.f32.mrf.mxu0
        %v811 = vadd.f32 0.0, %v810
        %812 = vdwg.mxu0
        %813 = vst [vmem:[#allocation2] sm:$0x1] 0.0
        %814 = vst [vmem:[#allocation2 + $0x21] sm:$0x1] 0.0
        %815 = vst [vmem:[#allocation2 + $0x1] sm:$0xff] %v802
        %816 = vst [vmem:[#allocation2 + $0x9] sm:$0xff] %v805
        %817 = vst [vmem:[#allocation2 + $0x11] sm:$0xff] %v808
        %818 = vst [vmem:[#allocation2 + $0x19] sm:$0xff] %v811
        %v819 = vld [vmem:[#allocation2] sm:$0xff]
        %v820 = vld [vmem:[#allocation2 + $0x8] sm:$0xff]
        %v821 = vld [vmem:[#allocation2 + $0x10] sm:$0xff]
        %v822 = vld [vmem:[#allocation2 + $0x18] sm:$0xff]
        %v823 = vld [vmem:[%s7] sm:$0xff]
        %v824 = vld [vmem:[%s7 + $0x8] sm:$0xff]
        %v825 = vld [vmem:[%s7 + $0x10] sm:$0xff]
        %v826 = vld [vmem:[%s7 + $0x18] sm:$0xff]
        %v827 = vld [vmem:[%s7 + $0x20] sm:$0xff]
        %v828 = vld [vmem:[%s7 + $0x28] sm:$0xff]
        %v829 = vld [vmem:[%s7 + $0x30] sm:$0xff]
        %v830 = vld [vmem:[%s7 + $0x38] sm:$0xff]
        %v831 = vld [vmem:[%s7 + $0x40] sm:$0xff]
        %v832 = vld [vmem:[%s7 + $0x48] sm:$0xff]
        %v833 = vld [vmem:[%s7 + $0x50] sm:$0xff]
        %v834 = vld [vmem:[%s7 + $0x58] sm:$0xff]
        %v835 = vld [vmem:[%s7 + $0x60] sm:$0xff]
        %v836 = vld [vmem:[%s7 + $0x68] sm:$0xff]
        %v837 = vld [vmem:[%s7 + $0x70] sm:$0xff]
        %v838 = vld [vmem:[%s7 + $0x78] sm:$0xff]
        %v839 = vld [vmem:[#allocation2 + $0x1] sm:$0xff]
        %v840 = vld [vmem:[#allocation2 + $0x9] sm:$0xff]
        %v841 = vld [vmem:[#allocation2 + $0x11] sm:$0xff]
        %v842 = vld [vmem:[#allocation2 + $0x19] sm:$0xff]
        %s843 = scalar_lea.vmem %s7, 128
        %v844 = vld [vmem:[%s843] sm:$0xff]
        %v845 = vld [vmem:[%s843 + $0x8] sm:$0xff]
        %v846 = vld [vmem:[%s843 + $0x10] sm:$0xff]
        %v847 = vld [vmem:[%s843 + $0x18] sm:$0xff]
        %v848 = vld [vmem:[%s843 + $0x20] sm:$0xff]
        %v849 = vld [vmem:[%s843 + $0x28] sm:$0xff]
        %v850 = vld [vmem:[%s843 + $0x30] sm:$0xff]
        %v851 = vld [vmem:[%s843 + $0x38] sm:$0xff]
        %v852 = vld [vmem:[%s843 + $0x40] sm:$0xff]
        %v853 = vld [vmem:[%s843 + $0x48] sm:$0xff]
        %v854 = vld [vmem:[%s843 + $0x50] sm:$0xff]
        %v855 = vld [vmem:[%s843 + $0x58] sm:$0xff]
        %v856 = vld [vmem:[%s843 + $0x60] sm:$0xff]
        %v857 = vld [vmem:[%s843 + $0x68] sm:$0xff]
        %v858 = vld [vmem:[%s843 + $0x70] sm:$0xff]
        %v859 = vld [vmem:[%s843 + $0x78] sm:$0xff]
        %860 = vmatpush.msra.mxu0 %v859
        %861 = vmatpush.msra.mxu0 %v858
        %862 = vmatpush.msra.mxu0 %v857
        %863 = vmatpush.msra.mxu0 %v856
        %864 = vmatpush.msra.mxu0 %v855
        %865 = vmatpush.msra.mxu0 %v854
        %866 = vmatpush.msra.mxu0 %v853
        %867 = vmatpush.msra.mxu0 %v852
        %868 = vmatpush.msra.mxu0 %v851
        %869 = vmatpush.msra.mxu0 %v850
        %870 = vmatpush.msra.mxu0 %v849
        %871 = vmatpush.msra.mxu0 %v848
        %872 = vmatpush.msra.mxu0 %v847
        %873 = vmatpush.msra.mxu0 %v846
        %874 = vmatpush.msra.mxu0 %v845
        %875 = vmatpush.msra.mxu0 %v844
        %876 = vmatmul.f32.gmra.mxu0 %v839
        %v877 = vpop.f32.mrf.mxu0
        %v878 = vadd.f32 0.0, %v877
        %879 = vmatmul.f32.gmra.mxu0 %v840
        %v880 = vpop.f32.mrf.mxu0
        %v881 = vadd.f32 0.0, %v880
        %882 = vmatmul.f32.gmra.mxu0 %v841
        %v883 = vpop.f32.mrf.mxu0
        %v884 = vadd.f32 0.0, %v883
        %885 = vmatmul.f32.gmra.mxu0 %v842
        %v886 = vpop.f32.mrf.mxu0
        %v887 = vadd.f32 0.0, %v886
        %888 = vdwg.mxu0
        %889 = vmatpush.msra.mxu0 %v838
        %890 = vmatpush.msra.mxu0 %v837
        %891 = vmatpush.msra.mxu0 %v836
        %892 = vmatpush.msra.mxu0 %v835
        %893 = vmatpush.msra.mxu0 %v834
        %894 = vmatpush.msra.mxu0 %v833
        %895 = vmatpush.msra.mxu0 %v832
        %896 = vmatpush.msra.mxu0 %v831
        %897 = vmatpush.msra.mxu0 %v830
        %898 = vmatpush.msra.mxu0 %v829
        %899 = vmatpush.msra.mxu0 %v828
        %900 = vmatpush.msra.mxu0 %v827
        %901 = vmatpush.msra.mxu0 %v826
        %902 = vmatpush.msra.mxu0 %v825
        %903 = vmatpush.msra.mxu0 %v824
        %904 = vmatpush.msra.mxu0 %v823
        %905 = vmatmul.f32.gmra.mxu0 %v819
        %v906 = vpop.f32.mrf.mxu0
        %v907 = vadd.f32 %v878, %v906
        %908 = vmatmul.f32.gmra.mxu0 %v820
        %v909 = vpop.f32.mrf.mxu0
        %v910 = vadd.f32 %v881, %v909
        %911 = vmatmul.f32.gmra.mxu0 %v821
        %v912 = vpop.f32.mrf.mxu0
        %v913 = vadd.f32 %v884, %v912
        %914 = vmatmul.f32.gmra.mxu0 %v822
        %v915 = vpop.f32.mrf.mxu0
        %v916 = vadd.f32 %v887, %v915
        %917 = vdwg.mxu0
        %v918 = vld [vmem:[#allocation2 + $0x2] sm:$0xff]
        %v919 = vld [vmem:[#allocation2 + $0xa] sm:$0xff]
        %v920 = vld [vmem:[#allocation2 + $0x12] sm:$0xff]
        %v921 = vld [vmem:[#allocation2 + $0x1a] sm:$0xff]
        %s922 = scalar_lea.vmem %s7, 256
        %v923 = vld [vmem:[%s922] sm:$0xff]
        %v924 = vld [vmem:[%s922 + $0x8] sm:$0xff]
        %v925 = vld [vmem:[%s922 + $0x10] sm:$0xff]
        %v926 = vld [vmem:[%s922 + $0x18] sm:$0xff]
        %v927 = vld [vmem:[%s922 + $0x20] sm:$0xff]
        %v928 = vld [vmem:[%s922 + $0x28] sm:$0xff]
        %v929 = vld [vmem:[%s922 + $0x30] sm:$0xff]
        %v930 = vld [vmem:[%s922 + $0x38] sm:$0xff]
        %v931 = vld [vmem:[%s922 + $0x40] sm:$0xff]
        %v932 = vld [vmem:[%s922 + $0x48] sm:$0xff]
        %v933 = vld [vmem:[%s922 + $0x50] sm:$0xff]
        %v934 = vld [vmem:[%s922 + $0x58] sm:$0xff]
        %v935 = vld [vmem:[%s922 + $0x60] sm:$0xff]
        %v936 = vld [vmem:[%s922 + $0x68] sm:$0xff]
        %v937 = vld [vmem:[%s922 + $0x70] sm:$0xff]
        %v938 = vld [vmem:[%s922 + $0x78] sm:$0xff]
        %939 = vmatpush.msra.mxu0 %v938
        %940 = vmatpush.msra.mxu0 %v937
        %941 = vmatpush.msra.mxu0 %v936
        %942 = vmatpush.msra.mxu0 %v935
        %943 = vmatpush.msra.mxu0 %v934
        %944 = vmatpush.msra.mxu0 %v933
        %945 = vmatpush.msra.mxu0 %v932
        %946 = vmatpush.msra.mxu0 %v931
        %947 = vmatpush.msra.mxu0 %v930
        %948 = vmatpush.msra.mxu0 %v929
        %949 = vmatpush.msra.mxu0 %v928
        %950 = vmatpush.msra.mxu0 %v927
        %951 = vmatpush.msra.mxu0 %v926
        %952 = vmatpush.msra.mxu0 %v925
        %953 = vmatpush.msra.mxu0 %v924
        %954 = vmatpush.msra.mxu0 %v923
        %955 = vmatmul.f32.gmra.mxu0 %v918
        %v956 = vpop.f32.mrf.mxu0
        %v957 = vadd.f32 0.0, %v956
        %958 = vmatmul.f32.gmra.mxu0 %v919
        %v959 = vpop.f32.mrf.mxu0
        %v960 = vadd.f32 0.0, %v959
        %961 = vmatmul.f32.gmra.mxu0 %v920
        %v962 = vpop.f32.mrf.mxu0
        %v963 = vadd.f32 0.0, %v962
        %964 = vmatmul.f32.gmra.mxu0 %v921
        %v965 = vpop.f32.mrf.mxu0
        %v966 = vadd.f32 0.0, %v965
        %967 = vdwg.mxu0
        %v968 = vadd.f32 %v907, %v957
        %v969 = vadd.f32 %v910, %v960
        %v970 = vadd.f32 %v913, %v963
        %v971 = vadd.f32 %v916, %v966
        %v972 = vld [vmem:[%s8] sm:$0x1]
        %v974 = vperm.slane %v972, 0
        %v976 = vadd.f32 %v968, %v974
        %v977 = vadd.f32 %v969, %v974
        %v978 = vadd.f32 %v970, %v974
        %v979 = vadd.f32 %v971, %v974
        %v980 = vmax.f32 %v976, 0.0
        %v981 = vmax.f32 %v977, 0.0
        %v982 = vmax.f32 %v978, 0.0
        %v983 = vmax.f32 %v979, 0.0
        %v984 = vld [vmem:[%s9] sm:$0xff]
        %v985 = vld [vmem:[%s9 + $0x8] sm:$0xff]
        %v986 = vld [vmem:[%s9 + $0x10] sm:$0xff]
        %v987 = vld [vmem:[%s9 + $0x18] sm:$0xff]
        %v988 = vld [vmem:[%s9 + $0x20] sm:$0xff]
        %v989 = vld [vmem:[%s9 + $0x28] sm:$0xff]
        %v990 = vld [vmem:[%s9 + $0x30] sm:$0xff]
        %v991 = vld [vmem:[%s9 + $0x38] sm:$0xff]
        %vm992 = vcmask 261120
        %v994 = vsel %vm992, %v984, 0
        %v997 = vsel %vm992, %v985, 0
        %v1000 = vsel %vm992, %v986, 0
        %v1003 = vsel %vm992, %v987, 0
        %v1006 = vsel %vm992, %v988, 0
        %v1009 = vsel %vm992, %v989, 0
        %v1012 = vsel %vm992, %v990, 0
        %v1015 = vsel %vm992, %v991, 0
        %1017 = vmatpush.msra.mxu0 0.0
        %1018 = vmatpush.msra.mxu0 0.0
        %1019 = vmatpush.msra.mxu0 0.0
        %1020 = vmatpush.msra.mxu0 0.0
        %1021 = vmatpush.msra.mxu0 0.0
        %1022 = vmatpush.msra.mxu0 0.0
        %1023 = vmatpush.msra.mxu0 0.0
        %1024 = vmatpush.msra.mxu0 0.0
        %1025 = vmatpush.msra.mxu0 0.0
        %1026 = vmatpush.msra.mxu0 0.0
        %1027 = vmatpush.msra.mxu0 0.0
        %1028 = vmatpush.msra.mxu0 0.0
        %1029 = vmatpush.msra.mxu0 %v983
        %1030 = vmatpush.msra.mxu0 %v982
        %1031 = vmatpush.msra.mxu0 %v981
        %1032 = vmatpush.msra.mxu0 %v980
        %1033 = vmatmul.f32.gmra.mxu0 %v994
        %v1034 = vpop.f32.mrf.mxu0
        %v1035 = vadd.f32 0.0, %v1034
        %1036 = vmatmul.f32.gmra.mxu0 %v997
        %v1037 = vpop.f32.mrf.mxu0
        %v1038 = vadd.f32 0.0, %v1037
        %1039 = vmatmul.f32.gmra.mxu0 %v1000
        %v1040 = vpop.f32.mrf.mxu0
        %v1041 = vadd.f32 0.0, %v1040
        %1042 = vmatmul.f32.gmra.mxu0 %v1003
        %v1043 = vpop.f32.mrf.mxu0
        %v1044 = vadd.f32 0.0, %v1043
        %1045 = vmatmul.f32.gmra.mxu0 %v1006
        %v1046 = vpop.f32.mrf.mxu0
        %v1047 = vadd.f32 0.0, %v1046
        %1048 = vmatmul.f32.gmra.mxu0 %v1009
        %v1049 = vpop.f32.mrf.mxu0
        %v1050 = vadd.f32 0.0, %v1049
        %1051 = vmatmul.f32.gmra.mxu0 %v1012
        %v1052 = vpop.f32.mrf.mxu0
        %v1053 = vadd.f32 0.0, %v1052
        %1054 = vmatmul.f32.gmra.mxu0 %v1015
        %v1055 = vpop.f32.mrf.mxu0
        %v1056 = vadd.f32 0.0, %v1055
        %1057 = vdwg.mxu0
        %v1058 = vld [vmem:[%s10] sm:$0xff]
        %v1059 = vld [vmem:[%s10 + $0x8] sm:$0xff]
        %v1060 = vld [vmem:[%s10 + $0x10] sm:$0xff]
        %v1061 = vld [vmem:[%s10 + $0x18] sm:$0xff]
        %v1062 = vld [vmem:[%s10 + $0x20] sm:$0xff]
        %v1063 = vld [vmem:[%s10 + $0x28] sm:$0xff]
        %v1064 = vld [vmem:[%s10 + $0x30] sm:$0xff]
        %v1065 = vld [vmem:[%s10 + $0x38] sm:$0xff]
        %v1067 = vsel %vm771, %v1035, 0
        %v1070 = vsel %vm771, %v1038, 0
        %v1073 = vsel %vm771, %v1041, 0
        %v1076 = vsel %vm771, %v1044, 0
        %v1079 = vsel %vm771, %v1047, 0
        %v1082 = vsel %vm771, %v1050, 0
        %v1085 = vsel %vm771, %v1053, 0
        %v1088 = vsel %vm771, %v1056, 0
        %1090 = vmatpush.msra.mxu0 0.0
        %1091 = vmatpush.msra.mxu0 0.0
        %1092 = vmatpush.msra.mxu0 0.0
        %1093 = vmatpush.msra.mxu0 0.0
        %1094 = vmatpush.msra.mxu0 0.0
        %1095 = vmatpush.msra.mxu0 0.0
        %1096 = vmatpush.msra.mxu0 0.0
        %1097 = vmatpush.msra.mxu0 0.0
        %1098 = vmatpush.msra.mxu0 %v1065
        %1099 = vmatpush.msra.mxu0 %v1064
        %1100 = vmatpush.msra.mxu0 %v1063
        %1101 = vmatpush.msra.mxu0 %v1062
        %1102 = vmatpush.msra.mxu0 %v1061
        %1103 = vmatpush.msra.mxu0 %v1060
        %1104 = vmatpush.msra.mxu0 %v1059
        %1105 = vmatpush.msra.mxu0 %v1058
        %1106 = vmatmul.f32.gmra.mxu0 %v1067
        %v1107 = vpop.f32.mrf.mxu0
        %v1108 = vadd.f32 0.0, %v1107
        %1109 = vmatmul.f32.gmra.mxu0 %v1070
        %v1110 = vpop.f32.mrf.mxu0
        %v1111 = vadd.f32 0.0, %v1110
        %1112 = vmatmul.f32.gmra.mxu0 %v1073
        %v1113 = vpop.f32.mrf.mxu0
        %v1114 = vadd.f32 0.0, %v1113
        %1115 = vmatmul.f32.gmra.mxu0 %v1076
        %v1116 = vpop.f32.mrf.mxu0
        %v1117 = vadd.f32 0.0, %v1116
        %1118 = vmatmul.f32.gmra.mxu0 %v1079
        %v1119 = vpop.f32.mrf.mxu0
        %v1120 = vadd.f32 0.0, %v1119
        %1121 = vmatmul.f32.gmra.mxu0 %v1082
        %v1122 = vpop.f32.mrf.mxu0
        %v1123 = vadd.f32 0.0, %v1122
        %1124 = vmatmul.f32.gmra.mxu0 %v1085
        %v1125 = vpop.f32.mrf.mxu0
        %v1126 = vadd.f32 0.0, %v1125
        %1127 = vmatmul.f32.gmra.mxu0 %v1088
        %v1128 = vpop.f32.mrf.mxu0
        %v1129 = vadd.f32 0.0, %v1128
        %1130 = vdwg.mxu0
        %1131 = vst [vmem:[#allocation2] sm:$0x1] 0.0
        %1132 = vst [vmem:[#allocation2 + $0x41] sm:$0x1] 0.0
        %1133 = vst [vmem:[#allocation2 + $0x1] sm:$0xff] %v1108
        %1134 = vst [vmem:[#allocation2 + $0x9] sm:$0xff] %v1111
        %1135 = vst [vmem:[#allocation2 + $0x11] sm:$0xff] %v1114
        %1136 = vst [vmem:[#allocation2 + $0x19] sm:$0xff] %v1117
        %1137 = vst [vmem:[#allocation2 + $0x21] sm:$0xff] %v1120
        %1138 = vst [vmem:[#allocation2 + $0x29] sm:$0xff] %v1123
        %1139 = vst [vmem:[#allocation2 + $0x31] sm:$0xff] %v1126
        %1140 = vst [vmem:[#allocation2 + $0x39] sm:$0xff] %v1129
        %v1141 = vld [vmem:[#allocation2] sm:$0xff]
        %v1142 = vld [vmem:[#allocation2 + $0x8] sm:$0xff]
        %v1143 = vld [vmem:[#allocation2 + $0x10] sm:$0xff]
        %v1144 = vld [vmem:[#allocation2 + $0x18] sm:$0xff]
        %v1145 = vld [vmem:[#allocation2 + $0x20] sm:$0xff]
        %v1146 = vld [vmem:[#allocation2 + $0x28] sm:$0xff]
        %v1147 = vld [vmem:[#allocation2 + $0x30] sm:$0xff]
        %v1148 = vld [vmem:[#allocation2 + $0x38] sm:$0xff]
        %v1149 = vld [vmem:[%s11] sm:$0xff]
        %v1150 = vld [vmem:[%s11 + $0x8] sm:$0xff]
        %v1151 = vld [vmem:[%s11 + $0x10] sm:$0xff]
        %v1152 = vld [vmem:[%s11 + $0x18] sm:$0xff]
        %v1153 = vld [vmem:[%s11 + $0x20] sm:$0xff]
        %v1154 = vld [vmem:[%s11 + $0x28] sm:$0xff]
        %v1155 = vld [vmem:[%s11 + $0x30] sm:$0xff]
        %v1156 = vld [vmem:[%s11 + $0x38] sm:$0xff]
        %v1157 = vld [vmem:[%s11 + $0x40] sm:$0xff]
        %v1158 = vld [vmem:[%s11 + $0x48] sm:$0xff]
        %v1159 = vld [vmem:[%s11 + $0x50] sm:$0xff]
        %v1160 = vld [vmem:[%s11 + $0x58] sm:$0xff]
        %v1161 = vld [vmem:[%s11 + $0x60] sm:$0xff]
        %v1162 = vld [vmem:[%s11 + $0x68] sm:$0xff]
        %v1163 = vld [vmem:[%s11 + $0x70] sm:$0xff]
        %v1164 = vld [vmem:[%s11 + $0x78] sm:$0xff]
        %v1165 = vld [vmem:[#allocation2 + $0x1] sm:$0xff]
        %v1166 = vld [vmem:[#allocation2 + $0x9] sm:$0xff]
        %v1167 = vld [vmem:[#allocation2 + $0x11] sm:$0xff]
        %v1168 = vld [vmem:[#allocation2 + $0x19] sm:$0xff]
        %v1169 = vld [vmem:[#allocation2 + $0x21] sm:$0xff]
        %v1170 = vld [vmem:[#allocation2 + $0x29] sm:$0xff]
        %v1171 = vld [vmem:[#allocation2 + $0x31] sm:$0xff]
        %v1172 = vld [vmem:[#allocation2 + $0x39] sm:$0xff]
        %s1173 = scalar_lea.vmem %s11, 128
        %v1174 = vld [vmem:[%s1173] sm:$0xff]
        %v1175 = vld [vmem:[%s1173 + $0x8] sm:$0xff]
        %v1176 = vld [vmem:[%s1173 + $0x10] sm:$0xff]
        %v1177 = vld [vmem:[%s1173 + $0x18] sm:$0xff]
        %v1178 = vld [vmem:[%s1173 + $0x20] sm:$0xff]
        %v1179 = vld [vmem:[%s1173 + $0x28] sm:$0xff]
        %v1180 = vld [vmem:[%s1173 + $0x30] sm:$0xff]
        %v1181 = vld [vmem:[%s1173 + $0x38] sm:$0xff]
        %v1182 = vld [vmem:[%s1173 + $0x40] sm:$0xff]
        %v1183 = vld [vmem:[%s1173 + $0x48] sm:$0xff]
        %v1184 = vld [vmem:[%s1173 + $0x50] sm:$0xff]
        %v1185 = vld [vmem:[%s1173 + $0x58] sm:$0xff]
        %v1186 = vld [vmem:[%s1173 + $0x60] sm:$0xff]
        %v1187 = vld [vmem:[%s1173 + $0x68] sm:$0xff]
        %v1188 = vld [vmem:[%s1173 + $0x70] sm:$0xff]
        %v1189 = vld [vmem:[%s1173 + $0x78] sm:$0xff]
        %1190 = vmatpush.msra.mxu0 %v1189
        %1191 = vmatpush.msra.mxu0 %v1188
        %1192 = vmatpush.msra.mxu0 %v1187
        %1193 = vmatpush.msra.mxu0 %v1186
        %1194 = vmatpush.msra.mxu0 %v1185
        %1195 = vmatpush.msra.mxu0 %v1184
        %1196 = vmatpush.msra.mxu0 %v1183
        %1197 = vmatpush.msra.mxu0 %v1182
        %1198 = vmatpush.msra.mxu0 %v1181
        %1199 = vmatpush.msra.mxu0 %v1180
        %1200 = vmatpush.msra.mxu0 %v1179
        %1201 = vmatpush.msra.mxu0 %v1178
        %1202 = vmatpush.msra.mxu0 %v1177
        %1203 = vmatpush.msra.mxu0 %v1176
        %1204 = vmatpush.msra.mxu0 %v1175
        %1205 = vmatpush.msra.mxu0 %v1174
        %1206 = vmatmul.f32.gmra.mxu0 %v1165
        %v1207 = vpop.f32.mrf.mxu0
        %v1208 = vadd.f32 0.0, %v1207
        %1209 = vmatmul.f32.gmra.mxu0 %v1166
        %v1210 = vpop.f32.mrf.mxu0
        %v1211 = vadd.f32 0.0, %v1210
        %1212 = vmatmul.f32.gmra.mxu0 %v1167
        %v1213 = vpop.f32.mrf.mxu0
        %v1214 = vadd.f32 0.0, %v1213
        %1215 = vmatmul.f32.gmra.mxu0 %v1168
        %v1216 = vpop.f32.mrf.mxu0
        %v1217 = vadd.f32 0.0, %v1216
        %1218 = vmatmul.f32.gmra.mxu0 %v1169
        %v1219 = vpop.f32.mrf.mxu0
        %v1220 = vadd.f32 0.0, %v1219
        %1221 = vmatmul.f32.gmra.mxu0 %v1170
        %v1222 = vpop.f32.mrf.mxu0
        %v1223 = vadd.f32 0.0, %v1222
        %1224 = vmatmul.f32.gmra.mxu0 %v1171
        %v1225 = vpop.f32.mrf.mxu0
        %v1226 = vadd.f32 0.0, %v1225
        %1227 = vmatmul.f32.gmra.mxu0 %v1172
        %v1228 = vpop.f32.mrf.mxu0
        %v1229 = vadd.f32 0.0, %v1228
        %1230 = vdwg.mxu0
        %1231 = vmatpush.msra.mxu0 %v1164
        %1232 = vmatpush.msra.mxu0 %v1163
        %1233 = vmatpush.msra.mxu0 %v1162
        %1234 = vmatpush.msra.mxu0 %v1161
        %1235 = vmatpush.msra.mxu0 %v1160
        %1236 = vmatpush.msra.mxu0 %v1159
        %1237 = vmatpush.msra.mxu0 %v1158
        %1238 = vmatpush.msra.mxu0 %v1157
        %1239 = vmatpush.msra.mxu0 %v1156
        %1240 = vmatpush.msra.mxu0 %v1155
        %1241 = vmatpush.msra.mxu0 %v1154
        %1242 = vmatpush.msra.mxu0 %v1153
        %1243 = vmatpush.msra.mxu0 %v1152
        %1244 = vmatpush.msra.mxu0 %v1151
        %1245 = vmatpush.msra.mxu0 %v1150
        %1246 = vmatpush.msra.mxu0 %v1149
        %1247 = vmatmul.f32.gmra.mxu0 %v1141
        %v1248 = vpop.f32.mrf.mxu0
        %v1249 = vadd.f32 %v1208, %v1248
        %1250 = vmatmul.f32.gmra.mxu0 %v1142
        %v1251 = vpop.f32.mrf.mxu0
        %v1252 = vadd.f32 %v1211, %v1251
        %1253 = vmatmul.f32.gmra.mxu0 %v1143
        %v1254 = vpop.f32.mrf.mxu0
        %v1255 = vadd.f32 %v1214, %v1254
        %1256 = vmatmul.f32.gmra.mxu0 %v1144
        %v1257 = vpop.f32.mrf.mxu0
        %v1258 = vadd.f32 %v1217, %v1257
        %1259 = vmatmul.f32.gmra.mxu0 %v1145
        %v1260 = vpop.f32.mrf.mxu0
        %v1261 = vadd.f32 %v1220, %v1260
        %1262 = vmatmul.f32.gmra.mxu0 %v1146
        %v1263 = vpop.f32.mrf.mxu0
        %v1264 = vadd.f32 %v1223, %v1263
        %1265 = vmatmul.f32.gmra.mxu0 %v1147
        %v1266 = vpop.f32.mrf.mxu0
        %v1267 = vadd.f32 %v1226, %v1266
        %1268 = vmatmul.f32.gmra.mxu0 %v1148
        %v1269 = vpop.f32.mrf.mxu0
        %v1270 = vadd.f32 %v1229, %v1269
        %1271 = vdwg.mxu0
        %v1272 = vld [vmem:[#allocation2 + $0x2] sm:$0xff]
        %v1273 = vld [vmem:[#allocation2 + $0xa] sm:$0xff]
        %v1274 = vld [vmem:[#allocation2 + $0x12] sm:$0xff]
        %v1275 = vld [vmem:[#allocation2 + $0x1a] sm:$0xff]
        %v1276 = vld [vmem:[#allocation2 + $0x22] sm:$0xff]
        %v1277 = vld [vmem:[#allocation2 + $0x2a] sm:$0xff]
        %v1278 = vld [vmem:[#allocation2 + $0x32] sm:$0xff]
        %v1279 = vld [vmem:[#allocation2 + $0x3a] sm:$0xff]
        %s1280 = scalar_lea.vmem %s11, 256
        %v1281 = vld [vmem:[%s1280] sm:$0xff]
        %v1282 = vld [vmem:[%s1280 + $0x8] sm:$0xff]
        %v1283 = vld [vmem:[%s1280 + $0x10] sm:$0xff]
        %v1284 = vld [vmem:[%s1280 + $0x18] sm:$0xff]
        %v1285 = vld [vmem:[%s1280 + $0x20] sm:$0xff]
        %v1286 = vld [vmem:[%s1280 + $0x28] sm:$0xff]
        %v1287 = vld [vmem:[%s1280 + $0x30] sm:$0xff]
        %v1288 = vld [vmem:[%s1280 + $0x38] sm:$0xff]
        %v1289 = vld [vmem:[%s1280 + $0x40] sm:$0xff]
        %v1290 = vld [vmem:[%s1280 + $0x48] sm:$0xff]
        %v1291 = vld [vmem:[%s1280 + $0x50] sm:$0xff]
        %v1292 = vld [vmem:[%s1280 + $0x58] sm:$0xff]
        %v1293 = vld [vmem:[%s1280 + $0x60] sm:$0xff]
        %v1294 = vld [vmem:[%s1280 + $0x68] sm:$0xff]
        %v1295 = vld [vmem:[%s1280 + $0x70] sm:$0xff]
        %v1296 = vld [vmem:[%s1280 + $0x78] sm:$0xff]
        %1297 = vmatpush.msra.mxu0 %v1296
        %1298 = vmatpush.msra.mxu0 %v1295
        %1299 = vmatpush.msra.mxu0 %v1294
        %1300 = vmatpush.msra.mxu0 %v1293
        %1301 = vmatpush.msra.mxu0 %v1292
        %1302 = vmatpush.msra.mxu0 %v1291
        %1303 = vmatpush.msra.mxu0 %v1290
        %1304 = vmatpush.msra.mxu0 %v1289
        %1305 = vmatpush.msra.mxu0 %v1288
        %1306 = vmatpush.msra.mxu0 %v1287
        %1307 = vmatpush.msra.mxu0 %v1286
        %1308 = vmatpush.msra.mxu0 %v1285
        %1309 = vmatpush.msra.mxu0 %v1284
        %1310 = vmatpush.msra.mxu0 %v1283
        %1311 = vmatpush.msra.mxu0 %v1282
        %1312 = vmatpush.msra.mxu0 %v1281
        %1313 = vmatmul.f32.gmra.mxu0 %v1272
        %v1314 = vpop.f32.mrf.mxu0
        %v1315 = vadd.f32 0.0, %v1314
        %1316 = vmatmul.f32.gmra.mxu0 %v1273
        %v1317 = vpop.f32.mrf.mxu0
        %v1318 = vadd.f32 0.0, %v1317
        %1319 = vmatmul.f32.gmra.mxu0 %v1274
        %v1320 = vpop.f32.mrf.mxu0
        %v1321 = vadd.f32 0.0, %v1320
        %1322 = vmatmul.f32.gmra.mxu0 %v1275
        %v1323 = vpop.f32.mrf.mxu0
        %v1324 = vadd.f32 0.0, %v1323
        %1325 = vmatmul.f32.gmra.mxu0 %v1276
        %v1326 = vpop.f32.mrf.mxu0
        %v1327 = vadd.f32 0.0, %v1326
        %1328 = vmatmul.f32.gmra.mxu0 %v1277
        %v1329 = vpop.f32.mrf.mxu0
        %v1330 = vadd.f32 0.0, %v1329
        %1331 = vmatmul.f32.gmra.mxu0 %v1278
        %v1332 = vpop.f32.mrf.mxu0
        %v1333 = vadd.f32 0.0, %v1332
        %1334 = vmatmul.f32.gmra.mxu0 %v1279
        %v1335 = vpop.f32.mrf.mxu0
        %v1336 = vadd.f32 0.0, %v1335
        %1337 = vdwg.mxu0
        %v1338 = vadd.f32 %v1249, %v1315
        %v1339 = vadd.f32 %v1252, %v1318
        %v1340 = vadd.f32 %v1255, %v1321
        %v1341 = vadd.f32 %v1258, %v1324
        %v1342 = vadd.f32 %v1261, %v1327
        %v1343 = vadd.f32 %v1264, %v1330
        %v1344 = vadd.f32 %v1267, %v1333
        %v1345 = vadd.f32 %v1270, %v1336
        %v1346 = vld [vmem:[%s12] sm:$0x1]
        %v1348 = vperm.slane %v1346, 0
        %v1350 = vadd.f32 %v1338, %v1348
        %v1351 = vadd.f32 %v1339, %v1348
        %v1352 = vadd.f32 %v1340, %v1348
        %v1353 = vadd.f32 %v1341, %v1348
        %v1354 = vadd.f32 %v1342, %v1348
        %v1355 = vadd.f32 %v1343, %v1348
        %v1356 = vadd.f32 %v1344, %v1348
        %v1357 = vadd.f32 %v1345, %v1348
        %v1358 = vxor.u32 %v1350, 2147483648
        %v1359 = vxor.u32 %v1351, 2147483648
        %v1360 = vxor.u32 %v1352, 2147483648
        %v1361 = vxor.u32 %v1353, 2147483648
        %v1362 = vxor.u32 %v1354, 2147483648
        %v1363 = vxor.u32 %v1355, 2147483648
        %v1364 = vxor.u32 %v1356, 2147483648
        %v1365 = vxor.u32 %v1357, 2147483648
        %v1366 = vmul.f32 %v1358, 1.442695
        %v1367 = vpow.pop %v1366
        %v1368 = vmul.f32 %v1359, 1.442695
        %v1369 = vpow.pop %v1368
        %v1370 = vmul.f32 %v1360, 1.442695
        %v1371 = vpow.pop %v1370
        %v1372 = vmul.f32 %v1361, 1.442695
        %v1373 = vpow.pop %v1372
        %v1374 = vmul.f32 %v1362, 1.442695
        %v1375 = vpow.pop %v1374
        %v1376 = vmul.f32 %v1363, 1.442695
        %v1377 = vpow.pop %v1376
        %v1378 = vmul.f32 %v1364, 1.442695
        %v1379 = vpow.pop %v1378
        %v1380 = vmul.f32 %v1365, 1.442695
        %v1381 = vpow.pop %v1380
        %v1382 = vadd.f32 %v1367, 1.0
        %v1383 = vadd.f32 %v1369, 1.0
        %v1384 = vadd.f32 %v1371, 1.0
        %v1385 = vadd.f32 %v1373, 1.0
        %v1386 = vadd.f32 %v1375, 1.0
        %v1387 = vadd.f32 %v1377, 1.0
        %v1388 = vadd.f32 %v1379, 1.0
        %v1389 = vadd.f32 %v1381, 1.0
        %v1390 = vrcp.pop %v1382
        %v1391 = vmul.f32 %v1382, %v1390
        %v1392 = vsub.f32 1.0, %v1391
        %v1393 = vmul.f32 %v1390, %v1392
        %v1394 = vadd.f32 %v1390, %v1393
        %vm1395 = vweird.f32 %v1382
        %vm1396 = vweird.f32 %v1390
        %vm1397 = vmor %vm1395, %vm1396
        %v1398 = vsel %vm1397, %v1390, %v1394
        %v1399 = vand.u32 2147483647, %v1382
        %vm1400 = vcmp.eq.f32.partialorder %v1399, 8.507059e+37
        %v1401 = vand.u32 %v1382, 2147483648
        %v1402 = vor.u32 1.1754944e-38, %v1401
        %v1403 = vsel %vm1400, %v1402, %v1398
        %v1404 = vmul.f32 1.0, %v1403
        %v1405 = vrcp.pop %v1383
        %v1406 = vmul.f32 %v1383, %v1405
        %v1407 = vsub.f32 1.0, %v1406
        %v1408 = vmul.f32 %v1405, %v1407
        %v1409 = vadd.f32 %v1405, %v1408
        %vm1410 = vweird.f32 %v1383
        %vm1411 = vweird.f32 %v1405
        %vm1412 = vmor %vm1410, %vm1411
        %v1413 = vsel %vm1412, %v1405, %v1409
        %v1414 = vand.u32 2147483647, %v1383
        %vm1415 = vcmp.eq.f32.partialorder %v1414, 8.507059e+37
        %v1416 = vand.u32 %v1383, 2147483648
        %v1417 = vor.u32 1.1754944e-38, %v1416
        %v1418 = vsel %vm1415, %v1417, %v1413
        %v1419 = vmul.f32 1.0, %v1418
        %v1420 = vrcp.pop %v1384
        %v1421 = vmul.f32 %v1384, %v1420
        %v1422 = vsub.f32 1.0, %v1421
        %v1423 = vmul.f32 %v1420, %v1422
        %v1424 = vadd.f32 %v1420, %v1423
        %vm1425 = vweird.f32 %v1384
        %vm1426 = vweird.f32 %v1420
        %vm1427 = vmor %vm1425, %vm1426
        %v1428 = vsel %vm1427, %v1420, %v1424
        %v1429 = vand.u32 2147483647, %v1384
        %vm1430 = vcmp.eq.f32.partialorder %v1429, 8.507059e+37
        %v1431 = vand.u32 %v1384, 2147483648
        %v1432 = vor.u32 1.1754944e-38, %v1431
        %v1433 = vsel %vm1430, %v1432, %v1428
        %v1434 = vmul.f32 1.0, %v1433
        %v1435 = vrcp.pop %v1385
        %v1436 = vmul.f32 %v1385, %v1435
        %v1437 = vsub.f32 1.0, %v1436
        %v1438 = vmul.f32 %v1435, %v1437
        %v1439 = vadd.f32 %v1435, %v1438
        %vm1440 = vweird.f32 %v1385
        %vm1441 = vweird.f32 %v1435
        %vm1442 = vmor %vm1440, %vm1441
        %v1443 = vsel %vm1442, %v1435, %v1439
        %v1444 = vand.u32 2147483647, %v1385
        %vm1445 = vcmp.eq.f32.partialorder %v1444, 8.507059e+37
        %v1446 = vand.u32 %v1385, 2147483648
        %v1447 = vor.u32 1.1754944e-38, %v1446
        %v1448 = vsel %vm1445, %v1447, %v1443
        %v1449 = vmul.f32 1.0, %v1448
        %v1450 = vrcp.pop %v1386
        %v1451 = vmul.f32 %v1386, %v1450
        %v1452 = vsub.f32 1.0, %v1451
        %v1453 = vmul.f32 %v1450, %v1452
        %v1454 = vadd.f32 %v1450, %v1453
        %vm1455 = vweird.f32 %v1386
        %vm1456 = vweird.f32 %v1450
        %vm1457 = vmor %vm1455, %vm1456
        %v1458 = vsel %vm1457, %v1450, %v1454
        %v1459 = vand.u32 2147483647, %v1386
        %vm1460 = vcmp.eq.f32.partialorder %v1459, 8.507059e+37
        %v1461 = vand.u32 %v1386, 2147483648
        %v1462 = vor.u32 1.1754944e-38, %v1461
        %v1463 = vsel %vm1460, %v1462, %v1458
        %v1464 = vmul.f32 1.0, %v1463
        %v1465 = vrcp.pop %v1387
        %v1466 = vmul.f32 %v1387, %v1465
        %v1467 = vsub.f32 1.0, %v1466
        %v1468 = vmul.f32 %v1465, %v1467
        %v1469 = vadd.f32 %v1465, %v1468
        %vm1470 = vweird.f32 %v1387
        %vm1471 = vweird.f32 %v1465
        %vm1472 = vmor %vm1470, %vm1471
        %v1473 = vsel %vm1472, %v1465, %v1469
        %v1474 = vand.u32 2147483647, %v1387
        %vm1475 = vcmp.eq.f32.partialorder %v1474, 8.507059e+37
        %v1476 = vand.u32 %v1387, 2147483648
        %v1477 = vor.u32 1.1754944e-38, %v1476
        %v1478 = vsel %vm1475, %v1477, %v1473
        %v1479 = vmul.f32 1.0, %v1478
        %v1480 = vrcp.pop %v1388
        %v1481 = vmul.f32 %v1388, %v1480
        %v1482 = vsub.f32 1.0, %v1481
        %v1483 = vmul.f32 %v1480, %v1482
        %v1484 = vadd.f32 %v1480, %v1483
        %vm1485 = vweird.f32 %v1388
        %vm1486 = vweird.f32 %v1480
        %vm1487 = vmor %vm1485, %vm1486
        %v1488 = vsel %vm1487, %v1480, %v1484
        %v1489 = vand.u32 2147483647, %v1388
        %vm1490 = vcmp.eq.f32.partialorder %v1489, 8.507059e+37
        %v1491 = vand.u32 %v1388, 2147483648
        %v1492 = vor.u32 1.1754944e-38, %v1491
        %v1493 = vsel %vm1490, %v1492, %v1488
        %v1494 = vmul.f32 1.0, %v1493
        %v1495 = vrcp.pop %v1389
        %v1496 = vmul.f32 %v1389, %v1495
        %v1497 = vsub.f32 1.0, %v1496
        %v1498 = vmul.f32 %v1495, %v1497
        %v1499 = vadd.f32 %v1495, %v1498
        %vm1500 = vweird.f32 %v1389
        %vm1501 = vweird.f32 %v1495
        %vm1502 = vmor %vm1500, %vm1501
        %v1503 = vsel %vm1502, %v1495, %v1499
        %v1504 = vand.u32 2147483647, %v1389
        %vm1505 = vcmp.eq.f32.partialorder %v1504, 8.507059e+37
        %v1506 = vand.u32 %v1389, 2147483648
        %v1507 = vor.u32 1.1754944e-38, %v1506
        %v1508 = vsel %vm1505, %v1507, %v1503
        %v1509 = vmul.f32 1.0, %v1508
        %1510 = vst.msk [vmem:[%s433] sm:$0xff] %vm771, %v1404
        %1511 = vst.msk [vmem:[%s433 + $0x8] sm:$0xff] %vm771, %v1419
        %1512 = vst.msk [vmem:[%s433 + $0x10] sm:$0xff] %vm771, %v1434
        %1513 = vst.msk [vmem:[%s433 + $0x18] sm:$0xff] %vm771, %v1449
        %1514 = vst.msk [vmem:[%s433 + $0x20] sm:$0xff] %vm771, %v1464
        %1515 = vst.msk [vmem:[%s433 + $0x28] sm:$0xff] %vm771, %v1479
        %1516 = vst.msk [vmem:[%s433 + $0x30] sm:$0xff] %vm771, %v1494
        %1517 = vst.msk [vmem:[%s433 + $0x38] sm:$0xff] %vm771, %v1509
        %s1518 = sand.u32 %s313, 1
        %s1519 = scalar_lea.sflag [#allocation4], %s1518
        %s1520 = sand.u32 %s313, 1
        %s1521 = smul.addr %s1520, 64
        %s1522 = scalar_lea.vmem [#allocation3], %s1521
        // Predicated region
        $region73: #{_lambda_.1} parent=71 // pred_check
          %p1523 = pneg %p323
        $region74: #{_lambda_.1} parent=71 // pred_check_branch
          %1525 = sbr.rel (%p1523) target = $region76
        $region75: #{_lambda_.1} parent=71 // pred_region
          %1527 = vsyncadd %s1519, 0
          %s1528 = smul.addr %s27, 8
          %s1529 = smul.addr %s1528, 8
          %s1530 = scalar_lea.hbm %s13, %s1529
          %s1531 = sshll.u32 %s1522, 4
          %s1532 = int_to_ptr.vmem [resolvable:$true] %s1531
          %s1533 = sshll.u32 %s1530, 4
          %s1534 = int_to_ptr.hbm [resolvable:$true] %s1533
          %1539 = dma.vmem_to_hbm [thread:$0]  %s1532, 1024, %s1534, %s1519, 128, 128, 8
        $region76: #{_lambda_.1} parent=71 // pred_fallthru
          _
      $region72: #{_lambda_.1} parent=5 // pred_fallthru
        _
      %p1540 = scmp.le.s32.totalorder 2, %s22
      // Predicated region
      $region77: #{_lambda_.1} parent=5 // pred_check
        %p1541 = pneg %p1540
      $region78: #{_lambda_.1} parent=5 // pred_check_branch
        %1543 = sbr.rel (%p1541) target = $region80
      $region79: #{_lambda_.1} parent=5 // pred_region
        %s1544 = ssub.s32 %s22, 2
        // Predicated region
        $region81: #{_lambda_.1} parent=79 // pred_check
          %p1545 = pneg %p329
        $region82: #{_lambda_.1} parent=79 // pred_check_branch
          %1547 = sbr.rel (%p1545) target = $region84
        $region83: #{_lambda_.1} parent=79 // pred_region
          %s1548 = sand.u32 %s314, 1
          %s1549 = scalar_lea.sflag [#allocation4], %s1548
          %s1550 = sand.u32 %s314, 1
          %s1551 = smul.addr %s1550, 64
          %s1552 = scalar_lea.vmem [#allocation3], %s1551
          %1554 = dma.done %s1549, 1024
        $region84: #{_lambda_.1} parent=79 // pred_fallthru
          _
      $region80: #{_lambda_.1} parent=5 // pred_fallthru
        _
    $region6: #{_lambda_.1} parent=1 // loop_footer
      %s26 = sadd.s32 1, %s22
    $region7: #{_lambda_.1} parent=1 // loop_footer_branch
      %21 = sbr.rel target = $region3
    $region8: #{_lambda_.1} parent=1 // loop_exit
      _
    %1555 = vsyncpa [#allocation4], 1
    %s1556 = scalar_lea.sflag [#allocation4], 1
    %1557 = vsyncpa %s1556, 1

</llo_original>
